<compile_context>
chip_gen: v5e
topology: v5e:2x2
jax: 0.10.0
libtpu: 0.0.40
codegen_flags: <defaults>
</compile_context>

<pallas_src>
import jax
import jax.numpy as jnp
from jax.experimental import pallas as pl
from jax.experimental.pallas import tpu as pltpu


def _sigmoid(x):
    # sigmoid(x) == 0.5 * (tanh(0.5 * x) + 1): single EUP op + cheap VPU ops.
    return 0.5 * jnp.tanh(0.5 * x) + 0.5


def _chunk_lstm_kernel(x_ref, wxh_ref, rm_ref, wo_ref, h0_ref, c0_ref,
                       out_ref, h_sc, c_sc):
    t = pl.program_id(1)

    # Reset recurrent state at the start of every batch tile's chunk loop.
    @pl.when(t == 0)
    def _():
        h_sc[...] = h0_ref[...]
        c_sc[...] = c0_ref[...]

    Bt, M, D = x_ref.shape
    R = Bt * M

    x = x_ref[...].reshape(R, D)          # (R, D), input dtype
    h = h_sc[...]                         # (R, D) f32
    c = c_sc[...]                         # (R, D) f32

    # Fused gate pre-activations: [R, 2D] @ [2D, 4D] (bf16 in, f32 acc).
    xh = jnp.concatenate([x.astype(jnp.bfloat16), h.astype(jnp.bfloat16)],
                         axis=-1)
    gates = jnp.dot(xh, wxh_ref[...], preferred_element_type=jnp.float32)

    i_g = _sigmoid(gates[:, 0 * D:1 * D])
    f_g = _sigmoid(gates[:, 1 * D:2 * D])
    g_pre = gates[:, 2 * D:3 * D]
    o_g = _sigmoid(gates[:, 3 * D:4 * D])

    # g = tanh(blockdiag(reduce*mask) @ g_pre): per-batch causal mixing.
    # rm is tiny (R x R); kept f32 for accuracy — negligible MXU cost.
    g = jnp.tanh(jnp.dot(rm_ref[...], g_pre,
                         preferred_element_type=jnp.float32))

    c_new = f_g * c + i_g * g
    h_new = o_g * jnp.tanh(c_new)

    c_sc[...] = c_new
    h_sc[...] = h_new

    # Output projection (linear -> equivalent to applying after the concat).
    y = jnp.dot(h_new.astype(jnp.bfloat16), wo_ref[...],
                preferred_element_type=jnp.float32)
    out_ref[...] = y.reshape(Bt, M, D).astype(out_ref.dtype)


def _pick_batch_tile(B, M, target_rows=256):
    """Largest divisor Bt of B with Bt*M <= target_rows, keeping B//Bt >= 2
    when B >= 2 so the parallel (megacore) batch axis has length >= 2."""
    best = 1
    for bt in range(1, B + 1):
        if B % bt:
            continue
        if bt * M > target_rows:
            break
        if B >= 2 and B // bt < 2:
            continue
        best = bt
    return best


def chunk_lstm(seq_x, freqs_cos, freqs_sin, params, memseqlen, batch_tile=None):
    """seq_x: [B, S, D]. freqs_* unused (kept for API parity with the module)."""
    del freqs_cos, freqs_sin
    B, S, D = seq_x.shape
    M = memseqlen
    assert S % M == 0
    n_chunks = S // M

    Bt = _pick_batch_tile(B, M) if batch_tile is None else batch_tile
    assert B % Bt == 0
    R = Bt * M

    # --- glue: pack weights once in the wrapper (bf16 MXU operands) ---------
    wx = jnp.concatenate([params["wii_t"], params["wif_t"],
                          params["wig_t"], params["wio_t"]], axis=1)   # [D,4D]
    wh = jnp.concatenate([params["whi_t"], params["whf_t"],
                          params["whg_t"], params["who_t"]], axis=1)   # [D,4D]
    wxh = jnp.concatenate([wx, wh], axis=0).astype(jnp.bfloat16)       # [2D,4D]
    wo = params["wo_t"].astype(jnp.bfloat16)                           # [D,D]
    rm = (params["reduce"] * params["mask"]).astype(jnp.float32)       # [M,M]
    rm_bd = jnp.kron(jnp.eye(Bt, dtype=jnp.float32), rm)               # [R,R]
    h0 = jnp.tile(params["h"].astype(jnp.float32), (Bt, 1))            # [R,D]
    c0 = jnp.tile(params["c"].astype(jnp.float32), (Bt, 1))            # [R,D]

    # --- explicit VMEM budget (conservative: weights counted double-buffered)
    bx = Bt * M * D * seq_x.dtype.itemsize
    bw = (wxh.size * 2 + wo.size * 2 + rm_bd.size * 4
          + h0.size * 4 + c0.size * 4)
    bscratch = 2 * R * D * 4
    vmem_est = 2 * bx * 2 + 2 * bw + bscratch
    vmem_limit = int(min(max(32 << 20, vmem_est + (8 << 20)), 100 << 20))
    # TODO(synk): for very large D (>=2048) on v7x (64 MiB VMEM) the gate
    # dimension would additionally need tiling across a grid axis.

    def _const_spec(shape, mode):
        idx = lambda b, t: (0,) * len(shape)
        if mode is None:
            return pl.BlockSpec(shape, idx)
        return pl.BlockSpec(shape, idx, pipeline_mode=mode)

    def _build(weight_mode):
        return pl.pallas_call(
            _chunk_lstm_kernel,
            out_shape=jax.ShapeDtypeStruct((B, S, D), seq_x.dtype),
            grid_spec=pltpu.PrefetchScalarGridSpec(
                num_scalar_prefetch=0,
                grid=(B // Bt, n_chunks),
                in_specs=[
                    pl.BlockSpec((Bt, M, D), lambda b, t: (b, t, 0)),  # x tile
                    _const_spec((2 * D, 4 * D), weight_mode),          # [Wx;Wh]
                    _const_spec((R, R), weight_mode),                  # blockdiag rm
                    _const_spec((D, D), weight_mode),                  # Wo^T
                    _const_spec((R, D), weight_mode),                  # h0 tiled
                    _const_spec((R, D), weight_mode),                  # c0 tiled
                ],
                out_specs=pl.BlockSpec((Bt, M, D), lambda b, t: (b, t, 0)),
                scratch_shapes=[pltpu.VMEM((R, D), jnp.float32),       # h carry
                                pltpu.VMEM((R, D), jnp.float32)],      # c carry
            ),
            compiler_params=pltpu.CompilerParams(
                dimension_semantics=("parallel", "arbitrary"),
                vmem_limit_bytes=vmem_limit),
        )

    args = (seq_x, wxh, rm_bd, wo, h0, c0)
    try:
        # Single-buffer the constant-index resident operands (halves their
        # VMEM footprint); fall back if this JAX build rejects pipeline_mode.
        out = jax.block_until_ready(_build(pl.Buffered(1))(*args))
    except Exception:
        out = _build(None)(*args)
    # TODO(synk): resid_dropout omitted (dropout=0.0 / eval mode -> identity).
    return out


def chunk_lstm_reference(seq_x, params, memseqlen):
    """Pure-JAX f32 reference mirroring the PyTorch forward."""
    B, S, D = seq_x.shape
    M = memseqlen
    h = jnp.broadcast_to(params["h"][None], (B, M, D))
    c = jnp.broadcast_to(params["c"][None], (B, M, D))
    rm = (params["reduce"] * params["mask"])[None]
    outs = []
    for idx in range(0, S, M):
        x = seq_x[:, idx:idx + M]
        i = jax.nn.sigmoid(x @ params["wii_t"] + h @ params["whi_t"])
        f = jax.nn.sigmoid(x @ params["wif_t"] + h @ params["whf_t"])
        g = x @ params["wig_t"] + h @ params["whg_t"]
        g = jnp.tanh(jnp.matmul(rm, g))
        o = jax.nn.sigmoid(x @ params["wio_t"] + h @ params["who_t"])
        c = f * c + i * g
        h = o * jnp.tanh(c)
        outs.append(h)
    out = jnp.concatenate(outs, axis=1)
    return out @ params["wo_t"]


def init_params(key, dim, memseqlen):
    names = ["wii", "whi", "wif", "whf", "wig", "whg", "wio", "who", "wo"]
    keys = jax.random.split(key, len(names))
    params = {}
    for k, name in zip(keys, names):
        # PyTorch Linear stores W:[out,in], computes x @ W^T; we store W^T.
        w = jax.random.normal(k, (dim, dim), dtype=jnp.float32) * 0.02
        params[name + "_t"] = w
    params["h"] = jnp.zeros((memseqlen, dim), jnp.float32)
    params["c"] = jnp.zeros((memseqlen, dim), jnp.float32)
    tril = jnp.tril(jnp.ones((memseqlen, memseqlen), jnp.float32))
    params["reduce"] = tril / jnp.sum(tril, axis=-1, keepdims=True)
    params["mask"] = tril
    return params


if __name__ == "__main__":
    dim = 128
    memseqlen = 8
    seqlen = 32
    bsz = 2

    key = jax.random.PRNGKey(0)
    kp, kx = jax.random.split(key)
    params = init_params(kp, dim, memseqlen)
    seq_x = jax.random.normal(kx, (bsz, seqlen, dim), dtype=jnp.float32)
    freqs_cos = jnp.zeros((seqlen, dim // 2), jnp.float32)  # unused by forward
    freqs_sin = jnp.zeros((seqlen, dim // 2), jnp.float32)  # unused by forward

    out = chunk_lstm(seq_x, freqs_cos, freqs_sin, params, memseqlen)
    out = jax.block_until_ready(out)

    ref = jax.block_until_ready(chunk_lstm_reference(seq_x, params, memseqlen))
    assert out.shape == (bsz, seqlen, dim)
    # bf16 MXU operands (f32 accumulation) -> small drift vs the f32 reference.
    assert jnp.allclose(out, ref, atol=2e-2, rtol=2e-2), "mismatch vs reference"
    print("KERNEL_OK")
</pallas_src>

<mosaic_0001>
module attributes {stable_mosaic.version = 11 : i64} {
  func.func @_chunk_lstm_kernel(%arg0: i32, %arg1: i32, %arg2: memref<1x8x128xf32, #tpu.memory_space<vmem>>, %arg3: memref<256x512xbf16, #tpu.memory_space<vmem>>, %arg4: memref<8x8xf32, #tpu.memory_space<vmem>>, %arg5: memref<128x128xbf16, #tpu.memory_space<vmem>>, %arg6: memref<8x128xf32, #tpu.memory_space<vmem>>, %arg7: memref<8x128xf32, #tpu.memory_space<vmem>>, %arg8: memref<1x8x128xf32, #tpu.memory_space<vmem>>, %arg9: memref<8x128xf32, #tpu.memory_space<vmem>>, %arg10: memref<8x128xf32, #tpu.memory_space<vmem>>) attributes {dimension_semantics = [#tpu.dimension_semantics<parallel>, #tpu.dimension_semantics<arbitrary>], iteration_bounds = array<i64: 2, 4>, scalar_prefetch = 0 : i64, scratch_operands = 2 : i64, tpu.core_type = #tpu.core_type<tc>, window_params = [{transform_indices = @transform_0, window_bounds = array<i64: 1, 8, 128>}, {pipeline_mode = #tpu.pipeline_mode<synchronous>, transform_indices = @transform_1, window_bounds = array<i64: 256, 512>}, {pipeline_mode = #tpu.pipeline_mode<synchronous>, transform_indices = @transform_2, window_bounds = array<i64: 8, 8>}, {pipeline_mode = #tpu.pipeline_mode<synchronous>, transform_indices = @transform_3, window_bounds = array<i64: 128, 128>}, {pipeline_mode = #tpu.pipeline_mode<synchronous>, transform_indices = @transform_4, window_bounds = array<i64: 8, 128>}, {pipeline_mode = #tpu.pipeline_mode<synchronous>, transform_indices = @transform_5, window_bounds = array<i64: 8, 128>}, {transform_indices = @transform_6, window_bounds = array<i64: 1, 8, 128>}]} {
    %c0_i32 = arith.constant 0 : i32
    %0 = arith.cmpi eq, %arg1, %c0_i32 : i32
    %1 = arith.extui %0 : i1 to i32
    %c0_i32_0 = arith.constant 0 : i32
    %2 = arith.cmpi ne, %1, %c0_i32_0 : i32
    scf.if %2 {
      %c0_31 = arith.constant 0 : index
      %c0_32 = arith.constant 0 : index
      %52 = vector.load %arg6[%c0_31, %c0_32] : memref<8x128xf32, #tpu.memory_space<vmem>>, vector<8x128xf32>
      %c0_33 = arith.constant 0 : index
      %c0_34 = arith.constant 0 : index
      %53 = vector.load %arg9[%c0_33, %c0_34] : memref<8x128xf32, #tpu.memory_space<vmem>>, vector<8x128xf32>
      tpu.vector_store %arg9[%c0_33, %c0_34], %52 {strides = array<i32>} : memref<8x128xf32, #tpu.memory_space<vmem>>, vector<8x128xf32>,
      %c0_35 = arith.constant 0 : index
      %c0_36 = arith.constant 0 : index
      %54 = vector.load %arg7[%c0_35, %c0_36] : memref<8x128xf32, #tpu.memory_space<vmem>>, vector<8x128xf32>
      %c0_37 = arith.constant 0 : index
      %c0_38 = arith.constant 0 : index
      %55 = vector.load %arg10[%c0_37, %c0_38] : memref<8x128xf32, #tpu.memory_space<vmem>>, vector<8x128xf32>
      tpu.vector_store %arg10[%c0_37, %c0_38], %54 {strides = array<i32>} : memref<8x128xf32, #tpu.memory_space<vmem>>, vector<8x128xf32>,
    } else {
    }
    %c0 = arith.constant 0 : index
    %c0_1 = arith.constant 0 : index
    %c0_2 = arith.constant 0 : index
    %3 = vector.load %arg2[%c0, %c0_1, %c0_2] : memref<1x8x128xf32, #tpu.memory_space<vmem>>, vector<1x8x128xf32>
    %4 = vector.shape_cast %3 : vector<1x8x128xf32> to vector<8x128xf32>
    %c0_3 = arith.constant 0 : index
    %c0_4 = arith.constant 0 : index
    %5 = vector.load %arg9[%c0_3, %c0_4] : memref<8x128xf32, #tpu.memory_space<vmem>>, vector<8x128xf32>
    %c0_5 = arith.constant 0 : index
    %c0_6 = arith.constant 0 : index
    %6 = vector.load %arg10[%c0_5, %c0_6] : memref<8x128xf32, #tpu.memory_space<vmem>>, vector<8x128xf32>
    %7 = arith.truncf %4 : vector<8x128xf32> to vector<8x128xbf16>
    %8 = arith.truncf %5 : vector<8x128xf32> to vector<8x128xbf16>
    %9 = tpu.concatenate %7, %8 in 1 : vector<8x128xbf16>, vector<8x128xbf16> -> vector<8x256xbf16>
    %c0_7 = arith.constant 0 : index
    %c0_8 = arith.constant 0 : index
    %10 = vector.load %arg3[%c0_7, %c0_8] : memref<256x512xbf16, #tpu.memory_space<vmem>>, vector<256x512xbf16>
    %cst = arith.constant dense<0.000000e+00> : vector<8x512xf32>
    %11 = tpu.matmul %9, %10, %cst {dimension_numbers = #tpu.dot_dimension_numbers<[1], [0], [0], [1], [0, 0, 1, 1], [], []>} : vector<8x256xbf16>, vector<256x512xbf16>, vector<8x512xf32> -> vector<8x512xf32>
    %12 = vector.extract_strided_slice %11 {offsets = [0, 0], sizes = [8, 128], strides = [1, 1]} : vector<8x512xf32> to vector<8x128xf32>
    %cst_9 = arith.constant 5.000000e-01 : f32
    %13 = vector.broadcast %cst_9 : f32 to vector<8x128xf32>
    %14 = arith.mulf %13, %12 : vector<8x128xf32>
    %15 = math.tanh %14 : vector<8x128xf32>
    %cst_10 = arith.constant 5.000000e-01 : f32
    %16 = vector.broadcast %cst_10 : f32 to vector<8x128xf32>
    %17 = arith.mulf %16, %15 : vector<8x128xf32>
    %cst_11 = arith.constant 5.000000e-01 : f32
    %18 = vector.broadcast %cst_11 : f32 to vector<8x128xf32>
    %19 = arith.addf %17, %18 : vector<8x128xf32>
    %20 = vector.extract_strided_slice %11 {offsets = [0, 128], sizes = [8, 128], strides = [1, 1]} : vector<8x512xf32> to vector<8x128xf32>
    %cst_12 = arith.constant 5.000000e-01 : f32
    %21 = vector.broadcast %cst_12 : f32 to vector<8x128xf32>
    %22 = arith.mulf %21, %20 : vector<8x128xf32>
    %23 = math.tanh %22 : vector<8x128xf32>
    %cst_13 = arith.constant 5.000000e-01 : f32
    %24 = vector.broadcast %cst_13 : f32 to vector<8x128xf32>
    %25 = arith.mulf %24, %23 : vector<8x128xf32>
    %cst_14 = arith.constant 5.000000e-01 : f32
    %26 = vector.broadcast %cst_14 : f32 to vector<8x128xf32>
    %27 = arith.addf %25, %26 : vector<8x128xf32>
    %28 = vector.extract_strided_slice %11 {offsets = [0, 256], sizes = [8, 128], strides = [1, 1]} : vector<8x512xf32> to vector<8x128xf32>
    %29 = vector.extract_strided_slice %11 {offsets = [0, 384], sizes = [8, 128], strides = [1, 1]} : vector<8x512xf32> to vector<8x128xf32>
    %cst_15 = arith.constant 5.000000e-01 : f32
    %30 = vector.broadcast %cst_15 : f32 to vector<8x128xf32>
    %31 = arith.mulf %30, %29 : vector<8x128xf32>
    %32 = math.tanh %31 : vector<8x128xf32>
    %cst_16 = arith.constant 5.000000e-01 : f32
    %33 = vector.broadcast %cst_16 : f32 to vector<8x128xf32>
    %34 = arith.mulf %33, %32 : vector<8x128xf32>
    %cst_17 = arith.constant 5.000000e-01 : f32
    %35 = vector.broadcast %cst_17 : f32 to vector<8x128xf32>
    %36 = arith.addf %34, %35 : vector<8x128xf32>
    %c0_18 = arith.constant 0 : index
    %c0_19 = arith.constant 0 : index
    %37 = vector.load %arg4[%c0_18, %c0_19] : memref<8x8xf32, #tpu.memory_space<vmem>>, vector<8x8xf32>
    %cst_20 = arith.constant dense<0.000000e+00> : vector<8x128xf32>
    %38 = tpu.matmul %37, %28, %cst_20 {dimension_numbers = #tpu.dot_dimension_numbers<[1], [0], [0], [1], [0, 0, 1, 1], [], []>} : vector<8x8xf32>, vector<8x128xf32>, vector<8x128xf32> -> vector<8x128xf32>
    %39 = math.tanh %38 : vector<8x128xf32>
    %40 = arith.mulf %27, %6 : vector<8x128xf32>
    %41 = arith.mulf %19, %39 : vector<8x128xf32>
    %42 = arith.addf %40, %41 : vector<8x128xf32>
    %43 = math.tanh %42 : vector<8x128xf32>
    %44 = arith.mulf %36, %43 : vector<8x128xf32>
    %c0_21 = arith.constant 0 : index
    %c0_22 = arith.constant 0 : index
    %45 = vector.load %arg10[%c0_21, %c0_22] : memref<8x128xf32, #tpu.memory_space<vmem>>, vector<8x128xf32>
    tpu.vector_store %arg10[%c0_21, %c0_22], %42 {strides = array<i32>} : memref<8x128xf32, #tpu.memory_space<vmem>>, vector<8x128xf32>,
    %c0_23 = arith.constant 0 : index
    %c0_24 = arith.constant 0 : index
    %46 = vector.load %arg9[%c0_23, %c0_24] : memref<8x128xf32, #tpu.memory_space<vmem>>, vector<8x128xf32>
    tpu.vector_store %arg9[%c0_23, %c0_24], %44 {strides = array<i32>} : memref<8x128xf32, #tpu.memory_space<vmem>>, vector<8x128xf32>,
    %47 = arith.truncf %44 : vector<8x128xf32> to vector<8x128xbf16>
    %c0_25 = arith.constant 0 : index
    %c0_26 = arith.constant 0 : index
    %48 = vector.load %arg5[%c0_25, %c0_26] : memref<128x128xbf16, #tpu.memory_space<vmem>>, vector<128x128xbf16>
    %cst_27 = arith.constant dense<0.000000e+00> : vector<8x128xf32>
    %49 = tpu.matmul %47, %48, %cst_27 {dimension_numbers = #tpu.dot_dimension_numbers<[1], [0], [0], [1], [0, 0, 1, 1], [], []>} : vector<8x128xbf16>, vector<128x128xbf16>, vector<8x128xf32> -> vector<8x128xf32>
    %50 = vector.shape_cast %49 : vector<8x128xf32> to vector<1x8x128xf32>
    %c0_28 = arith.constant 0 : index
    %c0_29 = arith.constant 0 : index
    %c0_30 = arith.constant 0 : index
    %51 = vector.load %arg8[%c0_28, %c0_29, %c0_30] : memref<1x8x128xf32, #tpu.memory_space<vmem>>, vector<1x8x128xf32>
    tpu.vector_store %arg8[%c0_28, %c0_29, %c0_30], %50 {strides = array<i32>} : memref<1x8x128xf32, #tpu.memory_space<vmem>>, vector<1x8x128xf32>,
    return
  }
  func.func @transform_0(%arg0: i32, %arg1: i32) -> (i32, i32, i32) {
    %c0_i32 = arith.constant 0 : i32
    %c0_i32_0 = arith.constant 0 : i32
    return %arg0, %arg1, %c0_i32 : i32, i32, i32
  }
  func.func @transform_1(%arg0: i32, %arg1: i32) -> (i32, i32) {
    %c0_i32 = arith.constant 0 : i32
    %c0_i32_0 = arith.constant 0 : i32
    %c0_i32_1 = arith.constant 0 : i32
    return %c0_i32, %c0_i32_0 : i32, i32
  }
  func.func @transform_2(%arg0: i32, %arg1: i32) -> (i32, i32) {
    %c0_i32 = arith.constant 0 : i32
    %c0_i32_0 = arith.constant 0 : i32
    %c0_i32_1 = arith.constant 0 : i32
    return %c0_i32, %c0_i32_0 : i32, i32
  }
  func.func @transform_3(%arg0: i32, %arg1: i32) -> (i32, i32) {
    %c0_i32 = arith.constant 0 : i32
    %c0_i32_0 = arith.constant 0 : i32
    %c0_i32_1 = arith.constant 0 : i32
    return %c0_i32, %c0_i32_0 : i32, i32
  }
  func.func @transform_4(%arg0: i32, %arg1: i32) -> (i32, i32) {
    %c0_i32 = arith.constant 0 : i32
    %c0_i32_0 = arith.constant 0 : i32
    %c0_i32_1 = arith.constant 0 : i32
    return %c0_i32, %c0_i32_0 : i32, i32
  }
  func.func @transform_5(%arg0: i32, %arg1: i32) -> (i32, i32) {
    %c0_i32 = arith.constant 0 : i32
    %c0_i32_0 = arith.constant 0 : i32
    %c0_i32_1 = arith.constant 0 : i32
    return %c0_i32, %c0_i32_0 : i32, i32
  }
  func.func @transform_6(%arg0: i32, %arg1: i32) -> (i32, i32, i32) {
    %c0_i32 = arith.constant 0 : i32
    %c0_i32_0 = arith.constant 0 : i32
    return %arg0, %arg1, %c0_i32 : i32, i32, i32
  }
}

module attributes {stable_mosaic.version = 11 : i64} {
  func.func @_chunk_lstm_kernel(%arg0: i32, %arg1: i32, %arg2: memref<1x8x128xf32, #tpu.memory_space<vmem>>, %arg3: memref<256x512xbf16, #tpu.memory_space<vmem>>, %arg4: memref<8x8xf32, #tpu.memory_space<vmem>>, %arg5: memref<128x128xbf16, #tpu.memory_space<vmem>>, %arg6: memref<8x128xf32, #tpu.memory_space<vmem>>, %arg7: memref<8x128xf32, #tpu.memory_space<vmem>>, %arg8: memref<1x8x128xf32, #tpu.memory_space<vmem>>, %arg9: memref<8x128xf32, #tpu.memory_space<vmem>>, %arg10: memref<8x128xf32, #tpu.memory_space<vmem>>) attributes {dimension_semantics = [#tpu.dimension_semantics<parallel>, #tpu.dimension_semantics<arbitrary>], iteration_bounds = array<i64: 2, 4>, scalar_prefetch = 0 : i64, scratch_operands = 2 : i64, tpu.core_type = #tpu.core_type<tc>, window_params = [{transform_indices = @transform_0, window_bounds = array<i64: 1, 8, 128>}, {pipeline_mode = #tpu.pipeline_mode<synchronous>, transform_indices = @transform_1, window_bounds = array<i64: 256, 512>}, {pipeline_mode = #tpu.pipeline_mode<synchronous>, transform_indices = @transform_2, window_bounds = array<i64: 8, 8>}, {pipeline_mode = #tpu.pipeline_mode<synchronous>, transform_indices = @transform_3, window_bounds = array<i64: 128, 128>}, {pipeline_mode = #tpu.pipeline_mode<synchronous>, transform_indices = @transform_4, window_bounds = array<i64: 8, 128>}, {pipeline_mode = #tpu.pipeline_mode<synchronous>, transform_indices = @transform_5, window_bounds = array<i64: 8, 128>}, {transform_indices = @transform_6, window_bounds = array<i64: 1, 8, 128>}]} {
    %c0_i32 = arith.constant 0 : i32
    %0 = arith.cmpi eq, %arg1, %c0_i32 : i32
    %1 = arith.extui %0 : i1 to i32
    %c0_i32_0 = arith.constant 0 : i32
    %2 = arith.cmpi ne, %1, %c0_i32_0 : i32
    scf.if %2 {
      %c0_31 = arith.constant 0 : index
      %c0_32 = arith.constant 0 : index
      %52 = vector.load %arg6[%c0_31, %c0_32] : memref<8x128xf32, #tpu.memory_space<vmem>>, vector<8x128xf32>
      %c0_33 = arith.constant 0 : index
      %c0_34 = arith.constant 0 : index
      %53 = vector.load %arg9[%c0_33, %c0_34] : memref<8x128xf32, #tpu.memory_space<vmem>>, vector<8x128xf32>
      tpu.vector_store %arg9[%c0_33, %c0_34], %52 {strides = array<i32>} : memref<8x128xf32, #tpu.memory_space<vmem>>, vector<8x128xf32>,
      %c0_35 = arith.constant 0 : index
      %c0_36 = arith.constant 0 : index
      %54 = vector.load %arg7[%c0_35, %c0_36] : memref<8x128xf32, #tpu.memory_space<vmem>>, vector<8x128xf32>
      %c0_37 = arith.constant 0 : index
      %c0_38 = arith.constant 0 : index
      %55 = vector.load %arg10[%c0_37, %c0_38] : memref<8x128xf32, #tpu.memory_space<vmem>>, vector<8x128xf32>
      tpu.vector_store %arg10[%c0_37, %c0_38], %54 {strides = array<i32>} : memref<8x128xf32, #tpu.memory_space<vmem>>, vector<8x128xf32>,
    } else {
    }
    %c0 = arith.constant 0 : index
    %c0_1 = arith.constant 0 : index
    %c0_2 = arith.constant 0 : index
    %3 = vector.load %arg2[%c0, %c0_1, %c0_2] : memref<1x8x128xf32, #tpu.memory_space<vmem>>, vector<1x8x128xf32>
    %4 = vector.shape_cast %3 : vector<1x8x128xf32> to vector<8x128xf32>
    %c0_3 = arith.constant 0 : index
    %c0_4 = arith.constant 0 : index
    %5 = vector.load %arg9[%c0_3, %c0_4] : memref<8x128xf32, #tpu.memory_space<vmem>>, vector<8x128xf32>
    %c0_5 = arith.constant 0 : index
    %c0_6 = arith.constant 0 : index
    %6 = vector.load %arg10[%c0_5, %c0_6] : memref<8x128xf32, #tpu.memory_space<vmem>>, vector<8x128xf32>
    %7 = arith.truncf %4 : vector<8x128xf32> to vector<8x128xbf16>
    %8 = arith.truncf %5 : vector<8x128xf32> to vector<8x128xbf16>
    %9 = tpu.concatenate %7, %8 in 1 : vector<8x128xbf16>, vector<8x128xbf16> -> vector<8x256xbf16>
    %c0_7 = arith.constant 0 : index
    %c0_8 = arith.constant 0 : index
    %10 = vector.load %arg3[%c0_7, %c0_8] : memref<256x512xbf16, #tpu.memory_space<vmem>>, vector<256x512xbf16>
    %cst = arith.constant dense<0.000000e+00> : vector<8x512xf32>
    %11 = tpu.matmul %9, %10, %cst {dimension_numbers = #tpu.dot_dimension_numbers<[1], [0], [0], [1], [0, 0, 1, 1], [], []>} : vector<8x256xbf16>, vector<256x512xbf16>, vector<8x512xf32> -> vector<8x512xf32>
    %12 = vector.extract_strided_slice %11 {offsets = [0, 0], sizes = [8, 128], strides = [1, 1]} : vector<8x512xf32> to vector<8x128xf32>
    %cst_9 = arith.constant 5.000000e-01 : f32
    %13 = vector.broadcast %cst_9 : f32 to vector<8x128xf32>
    %14 = arith.mulf %13, %12 : vector<8x128xf32>
    %15 = math.tanh %14 : vector<8x128xf32>
    %cst_10 = arith.constant 5.000000e-01 : f32
    %16 = vector.broadcast %cst_10 : f32 to vector<8x128xf32>
    %17 = arith.mulf %16, %15 : vector<8x128xf32>
    %cst_11 = arith.constant 5.000000e-01 : f32
    %18 = vector.broadcast %cst_11 : f32 to vector<8x128xf32>
    %19 = arith.addf %17, %18 : vector<8x128xf32>
    %20 = vector.extract_strided_slice %11 {offsets = [0, 128], sizes = [8, 128], strides = [1, 1]} : vector<8x512xf32> to vector<8x128xf32>
    %cst_12 = arith.constant 5.000000e-01 : f32
    %21 = vector.broadcast %cst_12 : f32 to vector<8x128xf32>
    %22 = arith.mulf %21, %20 : vector<8x128xf32>
    %23 = math.tanh %22 : vector<8x128xf32>
    %cst_13 = arith.constant 5.000000e-01 : f32
    %24 = vector.broadcast %cst_13 : f32 to vector<8x128xf32>
    %25 = arith.mulf %24, %23 : vector<8x128xf32>
    %cst_14 = arith.constant 5.000000e-01 : f32
    %26 = vector.broadcast %cst_14 : f32 to vector<8x128xf32>
    %27 = arith.addf %25, %26 : vector<8x128xf32>
    %28 = vector.extract_strided_slice %11 {offsets = [0, 256], sizes = [8, 128], strides = [1, 1]} : vector<8x512xf32> to vector<8x128xf32>
    %29 = vector.extract_strided_slice %11 {offsets = [0, 384], sizes = [8, 128], strides = [1, 1]} : vector<8x512xf32> to vector<8x128xf32>
    %cst_15 = arith.constant 5.000000e-01 : f32
    %30 = vector.broadcast %cst_15 : f32 to vector<8x128xf32>
    %31 = arith.mulf %30, %29 : vector<8x128xf32>
    %32 = math.tanh %31 : vector<8x128xf32>
    %cst_16 = arith.constant 5.000000e-01 : f32
    %33 = vector.broadcast %cst_16 : f32 to vector<8x128xf32>
    %34 = arith.mulf %33, %32 : vector<8x128xf32>
    %cst_17 = arith.constant 5.000000e-01 : f32
    %35 = vector.broadcast %cst_17 : f32 to vector<8x128xf32>
    %36 = arith.addf %34, %35 : vector<8x128xf32>
    %c0_18 = arith.constant 0 : index
    %c0_19 = arith.constant 0 : index
    %37 = vector.load %arg4[%c0_18, %c0_19] : memref<8x8xf32, #tpu.memory_space<vmem>>, vector<8x8xf32>
    %cst_20 = arith.constant dense<0.000000e+00> : vector<8x128xf32>
    %38 = tpu.matmul %37, %28, %cst_20 {dimension_numbers = #tpu.dot_dimension_numbers<[1], [0], [0], [1], [0, 0, 1, 1], [], []>} : vector<8x8xf32>, vector<8x128xf32>, vector<8x128xf32> -> vector<8x128xf32>
    %39 = math.tanh %38 : vector<8x128xf32>
    %40 = arith.mulf %27, %6 : vector<8x128xf32>
    %41 = arith.mulf %19, %39 : vector<8x128xf32>
    %42 = arith.addf %40, %41 : vector<8x128xf32>
    %43 = math.tanh %42 : vector<8x128xf32>
    %44 = arith.mulf %36, %43 : vector<8x128xf32>
    %c0_21 = arith.constant 0 : index
    %c0_22 = arith.constant 0 : index
    %45 = vector.load %arg10[%c0_21, %c0_22] : memref<8x128xf32, #tpu.memory_space<vmem>>, vector<8x128xf32>
    tpu.vector_store %arg10[%c0_21, %c0_22], %42 {strides = array<i32>} : memref<8x128xf32, #tpu.memory_space<vmem>>, vector<8x128xf32>,
    %c0_23 = arith.constant 0 : index
    %c0_24 = arith.constant 0 : index
    %46 = vector.load %arg9[%c0_23, %c0_24] : memref<8x128xf32, #tpu.memory_space<vmem>>, vector<8x128xf32>
    tpu.vector_store %arg9[%c0_23, %c0_24], %44 {strides = array<i32>} : memref<8x128xf32, #tpu.memory_space<vmem>>, vector<8x128xf32>,
    %47 = arith.truncf %44 : vector<8x128xf32> to vector<8x128xbf16>
    %c0_25 = arith.constant 0 : index
    %c0_26 = arith.constant 0 : index
    %48 = vector.load %arg5[%c0_25, %c0_26] : memref<128x128xbf16, #tpu.memory_space<vmem>>, vector<128x128xbf16>
    %cst_27 = arith.constant dense<0.000000e+00> : vector<8x128xf32>
    %49 = tpu.matmul %47, %48, %cst_27 {dimension_numbers = #tpu.dot_dimension_numbers<[1], [0], [0], [1], [0, 0, 1, 1], [], []>} : vector<8x128xbf16>, vector<128x128xbf16>, vector<8x128xf32> -> vector<8x128xf32>
    %50 = vector.shape_cast %49 : vector<8x128xf32> to vector<1x8x128xf32>
    %c0_28 = arith.constant 0 : index
    %c0_29 = arith.constant 0 : index
    %c0_30 = arith.constant 0 : index
    %51 = vector.load %arg8[%c0_28, %c0_29, %c0_30] : memref<1x8x128xf32, #tpu.memory_space<vmem>>, vector<1x8x128xf32>
    tpu.vector_store %arg8[%c0_28, %c0_29, %c0_30], %50 {strides = array<i32>} : memref<1x8x128xf32, #tpu.memory_space<vmem>>, vector<1x8x128xf32>,
    return
  }
  func.func @transform_0(%arg0: i32, %arg1: i32) -> (i32, i32, i32) {
    %c0_i32 = arith.constant 0 : i32
    %c0_i32_0 = arith.constant 0 : i32
    return %arg0, %arg1, %c0_i32 : i32, i32, i32
  }
  func.func @transform_1(%arg0: i32, %arg1: i32) -> (i32, i32) {
    %c0_i32 = arith.constant 0 : i32
    %c0_i32_0 = arith.constant 0 : i32
    %c0_i32_1 = arith.constant 0 : i32
    return %c0_i32, %c0_i32_0 : i32, i32
  }
  func.func @transform_2(%arg0: i32, %arg1: i32) -> (i32, i32) {
    %c0_i32 = arith.constant 0 : i32
    %c0_i32_0 = arith.constant 0 : i32
    %c0_i32_1 = arith.constant 0 : i32
    return %c0_i32, %c0_i32_0 : i32, i32
  }
  func.func @transform_3(%arg0: i32, %arg1: i32) -> (i32, i32) {
    %c0_i32 = arith.constant 0 : i32
    %c0_i32_0 = arith.constant 0 : i32
    %c0_i32_1 = arith.constant 0 : i32
    return %c0_i32, %c0_i32_0 : i32, i32
  }
  func.func @transform_4(%arg0: i32, %arg1: i32) -> (i32, i32) {
    %c0_i32 = arith.constant 0 : i32
    %c0_i32_0 = arith.constant 0 : i32
    %c0_i32_1 = arith.constant 0 : i32
    return %c0_i32, %c0_i32_0 : i32, i32
  }
  func.func @transform_5(%arg0: i32, %arg1: i32) -> (i32, i32) {
    %c0_i32 = arith.constant 0 : i32
    %c0_i32_0 = arith.constant 0 : i32
    %c0_i32_1 = arith.constant 0 : i32
    return %c0_i32, %c0_i32_0 : i32, i32
  }
  func.func @transform_6(%arg0: i32, %arg1: i32) -> (i32, i32, i32) {
    %c0_i32 = arith.constant 0 : i32
    %c0_i32_0 = arith.constant 0 : i32
    return %arg0, %arg1, %c0_i32 : i32, i32, i32
  }
}

</mosaic_0001>

<llo_original>
// kernel: tpu_custom_call.1
$region0: #{tpu_custom_call.1}
  #allocation0 [shape = 'u32[]', space=smem, size = 0x4, offset = 0x4, fixed_abs, tag = 'smem constant byte address 0x4 - core index']
  #allocation1 [shape = 'u32[72,128]{1,0:T(1,128)}', space=vmem, size = 0x9000, scoped, tag = 'internal scratch']
  #allocation2 [shape = 'f32[8,128]{1,0:T(8,128)}', space=vmem, size = 0x1000, scoped, tag = 'scratch operand']
  #allocation3 [shape = 'f32[8,128]{1,0:T(8,128)}', space=vmem, size = 0x1000, scoped, tag = 'scratch operand']
  %s0 = inlined_call_operand.hbm [shape: f32[2,32,128], index: 0, kind: input, shape index: {}]
  %s1 = inlined_call_operand.hbm [shape: bf16[256,512], index: 1, kind: input, shape index: {}]
  %s2 = inlined_call_operand.hbm [shape: f32[8,8], index: 2, kind: input, shape index: {}]
  %s3 = inlined_call_operand.hbm [shape: bf16[128,128], index: 3, kind: input, shape index: {}]
  %s4 = inlined_call_operand.hbm [shape: f32[8,128], index: 4, kind: input, shape index: {}]
  %s5 = inlined_call_operand.hbm [shape: f32[8,128], index: 5, kind: input, shape index: {}]
  %s6 = inlined_call_operand.hbm [shape: f32[2,32,128], index: 6, kind: output, shape index: {}]
  %s7 = sld [smem:[#allocation0]]
  $region85: #{tpu_custom_call.1} parent=0
    _
  %s9 = ssub.s32 1, %s7
  %s10 = scalar_select 0, %s9, %s7
  $region1: #{tpu_custom_call.1} parent=0
    #allocation4 [shape = 'u8[8192]{0}', space=vmem, size = 0x2000, scoped, tag = 'input window, operand 0']
    #allocation5 [shape = 's32[2]{0}', space=sflag, size = 0x8, scoped, tag = 'scoped memory for tpu_custom_call.1']
    #allocation6 [shape = 's32[2]{0}', space=sflag, size = 0x8, scoped, tag = 'scoped memory for tpu_custom_call.1']
    #allocation7 [shape = 'u8[262144]{0}', space=vmem, size = 0x40000, scoped, tag = 'input window, operand 1, single buffered']
    #allocation8 [shape = 's32[1]{0}', space=sflag, size = 0x4, scoped, tag = 'scoped memory for tpu_custom_call.1']
    #allocation9 [shape = 'u8[4096]{0}', space=vmem, size = 0x1000, scoped, tag = 'input window, operand 2, single buffered']
    #allocation10 [shape = 'u8[32768]{0}', space=vmem, size = 0x8000, scoped, tag = 'input window, operand 3, single buffered']
    #allocation11 [shape = 's32[1]{0}', space=sflag, size = 0x4, scoped, tag = 'scoped memory for tpu_custom_call.1']
    #allocation12 [shape = 'u8[4096]{0}', space=vmem, size = 0x1000, scoped, tag = 'input window, operand 4, single buffered']
    #allocation13 [shape = 'u8[4096]{0}', space=vmem, size = 0x1000, scoped, tag = 'input window, operand 5, single buffered']
    #allocation14 [shape = 's32[1]{0}', space=sflag, size = 0x4, scoped, tag = 'scoped memory for tpu_custom_call.1']
    #allocation15 [shape = 'u8[8192]{0}', space=vmem, size = 0x2000, scoped, tag = 'output window, operand 0']
    %11 = vsyncpa [#allocation5], 0
    %s12 = scalar_lea.sflag [#allocation5], 1
    %13 = vsyncpa %s12, 0
    %14 = vsyncpa [#allocation8], 0
    %15 = vsyncpa [#allocation11], 0
    %16 = vsyncpa [#allocation14], 0
    %17 = vsyncpa [#allocation6], 0
    %s18 = scalar_lea.sflag [#allocation6], 1
    %19 = vsyncpa %s18, 0
    loop: start=0, step=1, limit=10
    $region2: #{tpu_custom_call.1} parent=1 // loop_pre_header
      _
    $region3: #{tpu_custom_call.1} parent=1 // loop_header
      %s21 = sphi 0, %s25
      %p22 = scmp.ge.s32.totalorder %s21, 10
      %s28 = sphi 0, %s40
      %s29 = sphi 0, %s36
      %s30 = sphi 0, %s28
      %s31 = sphi 0, %s29
      %s32 = sphi 0, %s30
      %s33 = sphi 0, %s31
      %s45 = sphi 0, %s47
      %s48 = sphi 0, %s45
      %s49 = sphi 0, %s48
      %s65 = sphi 0, %s49
      %s69 = sphi 0, %s69
      %s71 = sphi 0, %s69
      %s72 = sphi 0, %s71
      %s86 = sphi 0, %s72
      %s90 = sphi 0, %s90
      %s92 = sphi 0, %s90
      %s93 = sphi 0, %s92
      %s107 = sphi 0, %s93
      %s111 = sphi 0, %s111
      %s113 = sphi 0, %s111
      %s114 = sphi 0, %s113
      %s128 = sphi 0, %s114
      %s132 = sphi 0, %s132
      %s134 = sphi 0, %s132
      %s135 = sphi 0, %s134
      %s149 = sphi 0, %s135
      %s153 = sphi 0, %s153
      %s155 = sphi 0, %s153
      %s156 = sphi 0, %s155
      %s170 = sphi 0, %s156
      %s178 = sphi 0, %s180
      %s181 = sphi 0, %s178
      %s182 = sphi 0, %s181
      %s198 = sphi 0, %s182
    $region4: #{tpu_custom_call.1} parent=1 // loop_header_branch
      %24 = sbr.rel (%p22) target = $region8
    $region5: #{tpu_custom_call.1} parent=1 // loop_body
      %s26 = ssub.s32 %s21, 1
      %s27 = ssub.s32 %s21, 2
      %s34 = sadd.s32 1, %s29
      %p35 = scmp.ge.s32.totalorder %s34, 4
      %s36 = scalar_select %p35, 0, %s34
      %s37 = sadd.s32 1, %s28
      %s38 = scalar_select %p35, %s37, %s28
      %p39 = scmp.ge.s32.totalorder %s38, 2
      %s40 = scalar_select %p39, 0, %s38
      %s41 = ssub.s32 %s28, %s40
      %s42 = ssub.s32 %s29, %s36
      %s43 = sor.u32 %s41, %s42
      %p44 = scmp.eq.s32.totalorder %s43, 0
      %s46 = sadd.s32 %s45, 1
      %s47 = scalar_select %p44, %s45, %s46
      %p50 = pneg %p44
      %p51 = scmp.eq.s32.totalorder %s21, 7
      %p52 = por %p50, %p51
      %p53 = scmp.ne.s32.totalorder %s45, %s48
      %p54 = scmp.eq.s32.totalorder %s21, 0
      %p55 = por %p53, %p54
      %p56 = scmp.ne.s32.totalorder %s45, %s48
      %p57 = scmp.eq.s32.totalorder %s26, 7
      %p58 = por %p56, %p57
      %p59 = scmp.ne.s32.totalorder %s48, %s49
      %p60 = scmp.eq.s32.totalorder %s26, 0
      %p61 = por %p59, %p60
      %p62 = scmp.ne.s32.totalorder %s48, %s49
      %p63 = scmp.eq.s32.totalorder %s27, 7
      %p64 = por %p62, %p63
      %p66 = scmp.ne.s32.totalorder %s49, %s65
      %p67 = scmp.eq.s32.totalorder %s27, 0
      %p68 = por %p66, %p67
      %s70 = sadd.s32 %s69, 1
      %p73 = scmp.eq.s32.totalorder %s21, 7
      %p74 = scmp.ne.s32.totalorder %s69, %s71
      %p75 = scmp.eq.s32.totalorder %s21, 0
      %p76 = por %p74, %p75
      %p77 = scmp.ne.s32.totalorder %s69, %s71
      %p78 = scmp.eq.s32.totalorder %s26, 7
      %p79 = por %p77, %p78
      %p80 = scmp.ne.s32.totalorder %s71, %s72
      %p81 = scmp.eq.s32.totalorder %s26, 0
      %p82 = por %p80, %p81
      %p83 = scmp.ne.s32.totalorder %s71, %s72
      %p84 = scmp.eq.s32.totalorder %s27, 7
      %p85 = por %p83, %p84
      %p87 = scmp.ne.s32.totalorder %s72, %s86
      %p88 = scmp.eq.s32.totalorder %s27, 0
      %p89 = por %p87, %p88
      %s91 = sadd.s32 %s90, 1
      %p94 = scmp.eq.s32.totalorder %s21, 7
      %p95 = scmp.ne.s32.totalorder %s90, %s92
      %p96 = scmp.eq.s32.totalorder %s21, 0
      %p97 = por %p95, %p96
      %p98 = scmp.ne.s32.totalorder %s90, %s92
      %p99 = scmp.eq.s32.totalorder %s26, 7
      %p100 = por %p98, %p99
      %p101 = scmp.ne.s32.totalorder %s92, %s93
      %p102 = scmp.eq.s32.totalorder %s26, 0
      %p103 = por %p101, %p102
      %p104 = scmp.ne.s32.totalorder %s92, %s93
      %p105 = scmp.eq.s32.totalorder %s27, 7
      %p106 = por %p104, %p105
      %p108 = scmp.ne.s32.totalorder %s93, %s107
      %p109 = scmp.eq.s32.totalorder %s27, 0
      %p110 = por %p108, %p109
      %s112 = sadd.s32 %s111, 1
      %p115 = scmp.eq.s32.totalorder %s21, 7
      %p116 = scmp.ne.s32.totalorder %s111, %s113
      %p117 = scmp.eq.s32.totalorder %s21, 0
      %p118 = por %p116, %p117
      %p119 = scmp.ne.s32.totalorder %s111, %s113
      %p120 = scmp.eq.s32.totalorder %s26, 7
      %p121 = por %p119, %p120
      %p122 = scmp.ne.s32.totalorder %s113, %s114
      %p123 = scmp.eq.s32.totalorder %s26, 0
      %p124 = por %p122, %p123
      %p125 = scmp.ne.s32.totalorder %s113, %s114
      %p126 = scmp.eq.s32.totalorder %s27, 7
      %p127 = por %p125, %p126
      %p129 = scmp.ne.s32.totalorder %s114, %s128
      %p130 = scmp.eq.s32.totalorder %s27, 0
      %p131 = por %p129, %p130
      %s133 = sadd.s32 %s132, 1
      %p136 = scmp.eq.s32.totalorder %s21, 7
      %p137 = scmp.ne.s32.totalorder %s132, %s134
      %p138 = scmp.eq.s32.totalorder %s21, 0
      %p139 = por %p137, %p138
      %p140 = scmp.ne.s32.totalorder %s132, %s134
      %p141 = scmp.eq.s32.totalorder %s26, 7
      %p142 = por %p140, %p141
      %p143 = scmp.ne.s32.totalorder %s134, %s135
      %p144 = scmp.eq.s32.totalorder %s26, 0
      %p145 = por %p143, %p144
      %p146 = scmp.ne.s32.totalorder %s134, %s135
      %p147 = scmp.eq.s32.totalorder %s27, 7
      %p148 = por %p146, %p147
      %p150 = scmp.ne.s32.totalorder %s135, %s149
      %p151 = scmp.eq.s32.totalorder %s27, 0
      %p152 = por %p150, %p151
      %s154 = sadd.s32 %s153, 1
      %p157 = scmp.eq.s32.totalorder %s21, 7
      %p158 = scmp.ne.s32.totalorder %s153, %s155
      %p159 = scmp.eq.s32.totalorder %s21, 0
      %p160 = por %p158, %p159
      %p161 = scmp.ne.s32.totalorder %s153, %s155
      %p162 = scmp.eq.s32.totalorder %s26, 7
      %p163 = por %p161, %p162
      %p164 = scmp.ne.s32.totalorder %s155, %s156
      %p165 = scmp.eq.s32.totalorder %s26, 0
      %p166 = por %p164, %p165
      %p167 = scmp.ne.s32.totalorder %s155, %s156
      %p168 = scmp.eq.s32.totalorder %s27, 7
      %p169 = por %p167, %p168
      %p171 = scmp.ne.s32.totalorder %s156, %s170
      %p172 = scmp.eq.s32.totalorder %s27, 0
      %p173 = por %p171, %p172
      %s174 = ssub.s32 %s28, %s40
      %s175 = ssub.s32 %s29, %s36
      %s176 = sor.u32 %s174, %s175
      %p177 = scmp.eq.s32.totalorder %s176, 0
      %s179 = sadd.s32 %s178, 1
      %s180 = scalar_select %p177, %s178, %s179
      %p183 = pneg %p177
      %p184 = scmp.eq.s32.totalorder %s21, 7
      %p185 = por %p183, %p184
      %p186 = scmp.ne.s32.totalorder %s178, %s181
      %p187 = scmp.eq.s32.totalorder %s21, 0
      %p188 = por %p186, %p187
      %p189 = scmp.ne.s32.totalorder %s178, %s181
      %p190 = scmp.eq.s32.totalorder %s26, 7
      %p191 = por %p189, %p190
      %p192 = scmp.ne.s32.totalorder %s181, %s182
      %p193 = scmp.eq.s32.totalorder %s26, 0
      %p194 = por %p192, %p193
      %p195 = scmp.ne.s32.totalorder %s181, %s182
      %p196 = scmp.eq.s32.totalorder %s27, 7
      %p197 = por %p195, %p196
      %p199 = scmp.ne.s32.totalorder %s182, %s198
      %p200 = scmp.eq.s32.totalorder %s27, 0
      %p201 = por %p199, %p200
      %p202 = scmp.le.s32.totalorder 1, %s21
      %p203 = scmp.lt.s32.totalorder %s21, 9
      %p204 = pnand %p202, %p203
      %p205 = pneg %p204
      // Predicated region
      $region9: #{tpu_custom_call.1} parent=5 // pred_check
        _
      $region10: #{tpu_custom_call.1} parent=5 // pred_check_branch
        %207 = sbr.rel (%p204) target = $region12
      $region11: #{tpu_custom_call.1} parent=5 // pred_region
        %s208 = ssub.s32 %s21, 1
        // Predicated region
        $region13: #{tpu_custom_call.1} parent=11 // pred_check
          %p209 = pneg %p82
        $region14: #{tpu_custom_call.1} parent=11 // pred_check_branch
          %211 = sbr.rel (%p209) target = $region16
        $region15: #{tpu_custom_call.1} parent=11 // pred_region
          %213 = vsyncadd [#allocation8], 0
          %s214 = sshll.u32 %s1, 4
          %s215 = int_to_ptr.hbm [resolvable:$true] %s214
          %s216 = sshll.u32 [#allocation7], 4
          %s217 = int_to_ptr.vmem [resolvable:$true] %s216
          %222 = dma.hbm_to_vmem [thread:$0]  %s215, 8192, %s217, [#allocation8], 256, 256, 16
        $region16: #{tpu_custom_call.1} parent=11 // pred_fallthru
          _
        // Predicated region
        $region17: #{tpu_custom_call.1} parent=11 // pred_check
          %p223 = pneg %p103
        $region18: #{tpu_custom_call.1} parent=11 // pred_check_branch
          %225 = sbr.rel (%p223) target = $region20
        $region19: #{tpu_custom_call.1} parent=11 // pred_region
          %227 = vsyncadd [#allocation8], 0
          %s229 = sshll.u32 %s2, 4
          %s230 = int_to_ptr.hbm [resolvable:$true] %s229
          %s231 = sshll.u32 [#allocation9], 4
          %s232 = int_to_ptr.vmem [resolvable:$true] %s231
          %234 = dma.hbm_to_vmem [thread:$0]  %s230, 128, %s232, [#allocation8]
        $region20: #{tpu_custom_call.1} parent=11 // pred_fallthru
          _
        // Predicated region
        $region21: #{tpu_custom_call.1} parent=11 // pred_check
          %p235 = pneg %p124
        $region22: #{tpu_custom_call.1} parent=11 // pred_check_branch
          %237 = sbr.rel (%p235) target = $region24
        $region23: #{tpu_custom_call.1} parent=11 // pred_region
          %239 = vsyncadd [#allocation11], 0
          %s240 = sshll.u32 %s3, 4
          %s241 = int_to_ptr.hbm [resolvable:$true] %s240
          %s242 = sshll.u32 [#allocation10], 4
          %s243 = int_to_ptr.vmem [resolvable:$true] %s242
          %248 = dma.hbm_to_vmem [thread:$0]  %s241, 1024, %s243, [#allocation11], 64, 64, 4
        $region24: #{tpu_custom_call.1} parent=11 // pred_fallthru
          _
        // Predicated region
        $region25: #{tpu_custom_call.1} parent=11 // pred_check
          %p249 = pneg %p145
        $region26: #{tpu_custom_call.1} parent=11 // pred_check_branch
          %251 = sbr.rel (%p249) target = $region28
        $region27: #{tpu_custom_call.1} parent=11 // pred_region
          %253 = vsyncadd [#allocation11], 0
          %s255 = sshll.u32 %s4, 4
          %s256 = int_to_ptr.hbm [resolvable:$true] %s255
          %s257 = sshll.u32 [#allocation12], 4
          %s258 = int_to_ptr.vmem [resolvable:$true] %s257
          %260 = dma.hbm_to_vmem [thread:$0]  %s256, 128, %s258, [#allocation11]
        $region28: #{tpu_custom_call.1} parent=11 // pred_fallthru
          _
        // Predicated region
        $region29: #{tpu_custom_call.1} parent=11 // pred_check
          %p261 = pneg %p166
        $region30: #{tpu_custom_call.1} parent=11 // pred_check_branch
          %263 = sbr.rel (%p261) target = $region32
        $region31: #{tpu_custom_call.1} parent=11 // pred_region
          %265 = vsyncadd [#allocation14], 0
          %s267 = sshll.u32 %s5, 4
          %s268 = int_to_ptr.hbm [resolvable:$true] %s267
          %s269 = sshll.u32 [#allocation13], 4
          %s270 = int_to_ptr.vmem [resolvable:$true] %s269
          %272 = dma.hbm_to_vmem [thread:$0]  %s268, 128, %s270, [#allocation14]
        $region32: #{tpu_custom_call.1} parent=11 // pred_fallthru
          _
      $region12: #{tpu_custom_call.1} parent=5 // pred_fallthru
        _
      %p273 = scmp.lt.s32.totalorder %s21, 8
      // Predicated region
      $region33: #{tpu_custom_call.1} parent=5 // pred_check
        %p274 = pneg %p273
      $region34: #{tpu_custom_call.1} parent=5 // pred_check_branch
        %276 = sbr.rel (%p274) target = $region36
      $region35: #{tpu_custom_call.1} parent=5 // pred_region
        // Predicated region
        $region37: #{tpu_custom_call.1} parent=35 // pred_check
          %p277 = pneg %p55
        $region38: #{tpu_custom_call.1} parent=35 // pred_check_branch
          %279 = sbr.rel (%p277) target = $region40
        $region39: #{tpu_custom_call.1} parent=35 // pred_region
          %s280 = sand.u32 %s45, 1
          %s281 = scalar_lea.sflag [#allocation5], %s280
          %s282 = sand.u32 %s45, 1
          %s283 = smul.addr %s282, 8
          %s284 = scalar_lea.vmem [#allocation4], %s283
          %286 = vsyncadd %s281, 0
          %s287 = smul.addr %s28, 4
          %s288 = sadd.s32 %s29, %s287
          %s289 = smul.addr %s288, 8
          %s290 = scalar_lea.hbm %s0, %s289
          %s292 = sshll.u32 %s290, 4
          %s293 = int_to_ptr.hbm [resolvable:$true] %s292
          %s294 = sshll.u32 %s284, 4
          %s295 = int_to_ptr.vmem [resolvable:$true] %s294
          %297 = dma.hbm_to_vmem [thread:$0]  %s293, 128, %s295, %s281
        $region40: #{tpu_custom_call.1} parent=35 // pred_fallthru
          _
      $region36: #{tpu_custom_call.1} parent=5 // pred_fallthru
        _
      %p298 = scmp.le.s32.totalorder 1, %s21
      %p299 = scmp.lt.s32.totalorder %s21, 9
      %p300 = pnand %p298, %p299
      %p301 = pneg %p300
      // Predicated region
      $region41: #{tpu_custom_call.1} parent=5 // pred_check
        _
      $region42: #{tpu_custom_call.1} parent=5 // pred_check_branch
        %303 = sbr.rel (%p300) target = $region44
      $region43: #{tpu_custom_call.1} parent=5 // pred_region
        %s304 = ssub.s32 %s21, 1
        %s305 = sand.u32 %s48, 1
        %s306 = scalar_lea.sflag [#allocation5], %s305
        %s307 = sand.u32 %s48, 1
        %s308 = smul.addr %s307, 8
        %s309 = scalar_lea.vmem [#allocation4], %s308
        // Predicated region
        $region45: #{tpu_custom_call.1} parent=43 // pred_check
          %p310 = pneg %p61
        $region46: #{tpu_custom_call.1} parent=43 // pred_check_branch
          %312 = sbr.rel (%p310) target = $region48
        $region47: #{tpu_custom_call.1} parent=43 // pred_region
          %314 = dma.done %s306, 128
        $region48: #{tpu_custom_call.1} parent=43 // pred_fallthru
          _
        // Predicated region
        $region49: #{tpu_custom_call.1} parent=43 // pred_check
          %p315 = pneg %p82
        $region50: #{tpu_custom_call.1} parent=43 // pred_check_branch
          %317 = sbr.rel (%p315) target = $region52
        $region51: #{tpu_custom_call.1} parent=43 // pred_region
          %319 = dma.done [#allocation8], 8192
        $region52: #{tpu_custom_call.1} parent=43 // pred_fallthru
          _
        // Predicated region
        $region53: #{tpu_custom_call.1} parent=43 // pred_check
          %p320 = pneg %p103
        $region54: #{tpu_custom_call.1} parent=43 // pred_check_branch
          %322 = sbr.rel (%p320) target = $region56
        $region55: #{tpu_custom_call.1} parent=43 // pred_region
          %324 = dma.done [#allocation8], 128
        $region56: #{tpu_custom_call.1} parent=43 // pred_fallthru
          _
        // Predicated region
        $region57: #{tpu_custom_call.1} parent=43 // pred_check
          %p325 = pneg %p124
        $region58: #{tpu_custom_call.1} parent=43 // pred_check_branch
          %327 = sbr.rel (%p325) target = $region60
        $region59: #{tpu_custom_call.1} parent=43 // pred_region
          %329 = dma.done [#allocation11], 1024
        $region60: #{tpu_custom_call.1} parent=43 // pred_fallthru
          _
        // Predicated region
        $region61: #{tpu_custom_call.1} parent=43 // pred_check
          %p330 = pneg %p145
        $region62: #{tpu_custom_call.1} parent=43 // pred_check_branch
          %332 = sbr.rel (%p330) target = $region64
        $region63: #{tpu_custom_call.1} parent=43 // pred_region
          %334 = dma.done [#allocation11], 128
        $region64: #{tpu_custom_call.1} parent=43 // pred_fallthru
          _
        // Predicated region
        $region65: #{tpu_custom_call.1} parent=43 // pred_check
          %p335 = pneg %p166
        $region66: #{tpu_custom_call.1} parent=43 // pred_check_branch
          %337 = sbr.rel (%p335) target = $region68
        $region67: #{tpu_custom_call.1} parent=43 // pred_region
          %339 = dma.done [#allocation14], 128
        $region68: #{tpu_custom_call.1} parent=43 // pred_fallthru
          _
        %s340 = sand.u32 %s48, 1
        %s341 = scalar_lea.sflag [#allocation5], %s340
        %s342 = sand.u32 %s48, 1
        %s343 = smul.addr %s342, 8
        %s344 = scalar_lea.vmem [#allocation4], %s343
        %p345 = pneg %p61
        %p346 = pneg %p58
        %p347 = pneg %p82
        %p348 = pneg %p79
        %p349 = pneg %p103
        %p350 = pneg %p100
        %p351 = pneg %p124
        %p352 = pneg %p121
        %p353 = pneg %p145
        %p354 = pneg %p142
        %p355 = pneg %p166
        %p356 = pneg %p163
        %p357 = pneg %p194
        %p358 = pneg %p191
        %s359 = sand.u32 %s181, 1
        %s360 = scalar_lea.sflag [#allocation6], %s359
        %s361 = sand.u32 %s181, 1
        %s362 = smul.addr %s361, 8
        %s363 = scalar_lea.vmem [#allocation15], %s362
        %p364 = scmp.eq.s32.totalorder %s31, 0
        // Predicated region
        $region69: #{tpu_custom_call.1} parent=43 // pred_check
          %p365 = pneg %p364
        $region70: #{tpu_custom_call.1} parent=43 // pred_check_branch
          %367 = sbr.rel (%p365) target = $region72
        $region71: #{tpu_custom_call.1} parent=43 // pred_region
          %v368 = vld [vmem:[#allocation12] sm:$0xff]
          %369 = vst [vmem:[#allocation2] sm:$0xff] %v368
          %v370 = vld [vmem:[#allocation13] sm:$0xff]
          %371 = vst [vmem:[#allocation3] sm:$0xff] %v370
        $region72: #{tpu_custom_call.1} parent=43 // pred_fallthru
          _
        %v372 = vld [vmem:[%s309] sm:$0xff]
        %v373 = vld [vmem:[#allocation2] sm:$0xff]
        %v374 = vld [vmem:[#allocation3] sm:$0xff]
        %v375 = vpack.c.bf16 %v372, %v372
        %v376 = vpack.c.bf16 %v373, %v373
        %v377 = vld [vmem:[#allocation7] sm:$0xff]
        %v378 = vld [vmem:[#allocation7 + $0x8] sm:$0xff]
        %v379 = vld [vmem:[#allocation7 + $0x10] sm:$0xff]
        %v380 = vld [vmem:[#allocation7 + $0x18] sm:$0xff]
        %v381 = vld [vmem:[#allocation7 + $0x20] sm:$0xff]
        %v382 = vld [vmem:[#allocation7 + $0x28] sm:$0xff]
        %v383 = vld [vmem:[#allocation7 + $0x30] sm:$0xff]
        %v384 = vld [vmem:[#allocation7 + $0x38] sm:$0xff]
        %v385 = vld [vmem:[#allocation7 + $0x40] sm:$0xff]
        %v386 = vld [vmem:[#allocation7 + $0x48] sm:$0xff]
        %v387 = vld [vmem:[#allocation7 + $0x50] sm:$0xff]
        %v388 = vld [vmem:[#allocation7 + $0x58] sm:$0xff]
        %v389 = vld [vmem:[#allocation7 + $0x60] sm:$0xff]
        %v390 = vld [vmem:[#allocation7 + $0x68] sm:$0xff]
        %v391 = vld [vmem:[#allocation7 + $0x70] sm:$0xff]
        %v392 = vld [vmem:[#allocation7 + $0x78] sm:$0xff]
        %v393 = vld [vmem:[#allocation7 + $0x80] sm:$0xff]
        %v394 = vld [vmem:[#allocation7 + $0x88] sm:$0xff]
        %v395 = vld [vmem:[#allocation7 + $0x90] sm:$0xff]
        %v396 = vld [vmem:[#allocation7 + $0x98] sm:$0xff]
        %v397 = vld [vmem:[#allocation7 + $0xa0] sm:$0xff]
        %v398 = vld [vmem:[#allocation7 + $0xa8] sm:$0xff]
        %v399 = vld [vmem:[#allocation7 + $0xb0] sm:$0xff]
        %v400 = vld [vmem:[#allocation7 + $0xb8] sm:$0xff]
        %v401 = vld [vmem:[#allocation7 + $0xc0] sm:$0xff]
        %v402 = vld [vmem:[#allocation7 + $0xc8] sm:$0xff]
        %v403 = vld [vmem:[#allocation7 + $0xd0] sm:$0xff]
        %v404 = vld [vmem:[#allocation7 + $0xd8] sm:$0xff]
        %v405 = vld [vmem:[#allocation7 + $0xe0] sm:$0xff]
        %v406 = vld [vmem:[#allocation7 + $0xe8] sm:$0xff]
        %v407 = vld [vmem:[#allocation7 + $0xf0] sm:$0xff]
        %v408 = vld [vmem:[#allocation7 + $0xf8] sm:$0xff]
        %v409 = vld [vmem:[#allocation7 + $0x100] sm:$0xff]
        %v410 = vld [vmem:[#allocation7 + $0x108] sm:$0xff]
        %v411 = vld [vmem:[#allocation7 + $0x110] sm:$0xff]
        %v412 = vld [vmem:[#allocation7 + $0x118] sm:$0xff]
        %v413 = vld [vmem:[#allocation7 + $0x120] sm:$0xff]
        %v414 = vld [vmem:[#allocation7 + $0x128] sm:$0xff]
        %v415 = vld [vmem:[#allocation7 + $0x130] sm:$0xff]
        %v416 = vld [vmem:[#allocation7 + $0x138] sm:$0xff]
        %v417 = vld [vmem:[#allocation7 + $0x140] sm:$0xff]
        %v418 = vld [vmem:[#allocation7 + $0x148] sm:$0xff]
        %v419 = vld [vmem:[#allocation7 + $0x150] sm:$0xff]
        %v420 = vld [vmem:[#allocation7 + $0x158] sm:$0xff]
        %v421 = vld [vmem:[#allocation7 + $0x160] sm:$0xff]
        %v422 = vld [vmem:[#allocation7 + $0x168] sm:$0xff]
        %v423 = vld [vmem:[#allocation7 + $0x170] sm:$0xff]
        %v424 = vld [vmem:[#allocation7 + $0x178] sm:$0xff]
        %v425 = vld [vmem:[#allocation7 + $0x180] sm:$0xff]
        %v426 = vld [vmem:[#allocation7 + $0x188] sm:$0xff]
        %v427 = vld [vmem:[#allocation7 + $0x190] sm:$0xff]
        %v428 = vld [vmem:[#allocation7 + $0x198] sm:$0xff]
        %v429 = vld [vmem:[#allocation7 + $0x1a0] sm:$0xff]
        %v430 = vld [vmem:[#allocation7 + $0x1a8] sm:$0xff]
        %v431 = vld [vmem:[#allocation7 + $0x1b0] sm:$0xff]
        %v432 = vld [vmem:[#allocation7 + $0x1b8] sm:$0xff]
        %v433 = vld [vmem:[#allocation7 + $0x1c0] sm:$0xff]
        %v434 = vld [vmem:[#allocation7 + $0x1c8] sm:$0xff]
        %v435 = vld [vmem:[#allocation7 + $0x1d0] sm:$0xff]
        %v436 = vld [vmem:[#allocation7 + $0x1d8] sm:$0xff]
        %v437 = vld [vmem:[#allocation7 + $0x1e0] sm:$0xff]
        %v438 = vld [vmem:[#allocation7 + $0x1e8] sm:$0xff]
        %v439 = vld [vmem:[#allocation7 + $0x1f0] sm:$0xff]
        %v440 = vld [vmem:[#allocation7 + $0x1f8] sm:$0xff]
        %v505 = vunpack.c.l.b16 %v377
        %v506 = vunpack.c.h.b16 %v377
        %v507 = vunpack.c.l.b16 %v378
        %v508 = vunpack.c.h.b16 %v378
        %v509 = vunpack.c.l.b16 %v379
        %v510 = vunpack.c.h.b16 %v379
        %v511 = vunpack.c.l.b16 %v380
        %v512 = vunpack.c.h.b16 %v380
        %v513 = vunpack.c.l.b16 %v381
        %v514 = vunpack.c.h.b16 %v381
        %v515 = vunpack.c.l.b16 %v382
        %v516 = vunpack.c.h.b16 %v382
        %v517 = vunpack.c.l.b16 %v383
        %v518 = vunpack.c.h.b16 %v383
        %v519 = vunpack.c.l.b16 %v384
        %v520 = vunpack.c.h.b16 %v384
        %v521 = vunpack.c.l.b16 %v385
        %v522 = vunpack.c.h.b16 %v385
        %v523 = vunpack.c.l.b16 %v386
        %v524 = vunpack.c.h.b16 %v386
        %v525 = vunpack.c.l.b16 %v387
        %v526 = vunpack.c.h.b16 %v387
        %v527 = vunpack.c.l.b16 %v388
        %v528 = vunpack.c.h.b16 %v388
        %v529 = vunpack.c.l.b16 %v389
        %v530 = vunpack.c.h.b16 %v389
        %v531 = vunpack.c.l.b16 %v390
        %v532 = vunpack.c.h.b16 %v390
        %v533 = vunpack.c.l.b16 %v391
        %v534 = vunpack.c.h.b16 %v391
        %v535 = vunpack.c.l.b16 %v392
        %v536 = vunpack.c.h.b16 %v392
        %v537 = vunpack.c.l.b16 %v393
        %v538 = vunpack.c.h.b16 %v393
        %v539 = vunpack.c.l.b16 %v394
        %v540 = vunpack.c.h.b16 %v394
        %v541 = vunpack.c.l.b16 %v395
        %v542 = vunpack.c.h.b16 %v395
        %v543 = vunpack.c.l.b16 %v396
        %v544 = vunpack.c.h.b16 %v396
        %v545 = vunpack.c.l.b16 %v397
        %v546 = vunpack.c.h.b16 %v397
        %v547 = vunpack.c.l.b16 %v398
        %v548 = vunpack.c.h.b16 %v398
        %v549 = vunpack.c.l.b16 %v399
        %v550 = vunpack.c.h.b16 %v399
        %v551 = vunpack.c.l.b16 %v400
        %v552 = vunpack.c.h.b16 %v400
        %v553 = vunpack.c.l.b16 %v401
        %v554 = vunpack.c.h.b16 %v401
        %v555 = vunpack.c.l.b16 %v402
        %v556 = vunpack.c.h.b16 %v402
        %v557 = vunpack.c.l.b16 %v403
        %v558 = vunpack.c.h.b16 %v403
        %v559 = vunpack.c.l.b16 %v404
        %v560 = vunpack.c.h.b16 %v404
        %v561 = vunpack.c.l.b16 %v405
        %v562 = vunpack.c.h.b16 %v405
        %v563 = vunpack.c.l.b16 %v406
        %v564 = vunpack.c.h.b16 %v406
        %v565 = vunpack.c.l.b16 %v407
        %v566 = vunpack.c.h.b16 %v407
        %v567 = vunpack.c.l.b16 %v408
        %v568 = vunpack.c.h.b16 %v408
        %v569 = vunpack.c.l.b16 %v409
        %v570 = vunpack.c.h.b16 %v409
        %v571 = vunpack.c.l.b16 %v410
        %v572 = vunpack.c.h.b16 %v410
        %v573 = vunpack.c.l.b16 %v411
        %v574 = vunpack.c.h.b16 %v411
        %v575 = vunpack.c.l.b16 %v412
        %v576 = vunpack.c.h.b16 %v412
        %v577 = vunpack.c.l.b16 %v413
        %v578 = vunpack.c.h.b16 %v413
        %v579 = vunpack.c.l.b16 %v414
        %v580 = vunpack.c.h.b16 %v414
        %v581 = vunpack.c.l.b16 %v415
        %v582 = vunpack.c.h.b16 %v415
        %v583 = vunpack.c.l.b16 %v416
        %v584 = vunpack.c.h.b16 %v416
        %v585 = vunpack.c.l.b16 %v417
        %v586 = vunpack.c.h.b16 %v417
        %v587 = vunpack.c.l.b16 %v418
        %v588 = vunpack.c.h.b16 %v418
        %v589 = vunpack.c.l.b16 %v419
        %v590 = vunpack.c.h.b16 %v419
        %v591 = vunpack.c.l.b16 %v420
        %v592 = vunpack.c.h.b16 %v420
        %v593 = vunpack.c.l.b16 %v421
        %v594 = vunpack.c.h.b16 %v421
        %v595 = vunpack.c.l.b16 %v422
        %v596 = vunpack.c.h.b16 %v422
        %v597 = vunpack.c.l.b16 %v423
        %v598 = vunpack.c.h.b16 %v423
        %v599 = vunpack.c.l.b16 %v424
        %v600 = vunpack.c.h.b16 %v424
        %v601 = vunpack.c.l.b16 %v425
        %v602 = vunpack.c.h.b16 %v425
        %v603 = vunpack.c.l.b16 %v426
        %v604 = vunpack.c.h.b16 %v426
        %v605 = vunpack.c.l.b16 %v427
        %v606 = vunpack.c.h.b16 %v427
        %v607 = vunpack.c.l.b16 %v428
        %v608 = vunpack.c.h.b16 %v428
        %v609 = vunpack.c.l.b16 %v429
        %v610 = vunpack.c.h.b16 %v429
        %v611 = vunpack.c.l.b16 %v430
        %v612 = vunpack.c.h.b16 %v430
        %v613 = vunpack.c.l.b16 %v431
        %v614 = vunpack.c.h.b16 %v431
        %v615 = vunpack.c.l.b16 %v432
        %v616 = vunpack.c.h.b16 %v432
        %v617 = vunpack.c.l.b16 %v433
        %v618 = vunpack.c.h.b16 %v433
        %v619 = vunpack.c.l.b16 %v434
        %v620 = vunpack.c.h.b16 %v434
        %v621 = vunpack.c.l.b16 %v435
        %v622 = vunpack.c.h.b16 %v435
        %v623 = vunpack.c.l.b16 %v436
        %v624 = vunpack.c.h.b16 %v436
        %v625 = vunpack.c.l.b16 %v437
        %v626 = vunpack.c.h.b16 %v437
        %v627 = vunpack.c.l.b16 %v438
        %v628 = vunpack.c.h.b16 %v438
        %v629 = vunpack.c.l.b16 %v439
        %v630 = vunpack.c.h.b16 %v439
        %v631 = vunpack.c.l.b16 %v440
        %v632 = vunpack.c.h.b16 %v440
        %v633 = vpack.c.b16 %v509, %v505
        %v634 = vpack.c.b16 %v510, %v506
        %v635 = vpack.c.b16 %v511, %v507
        %v636 = vpack.c.b16 %v512, %v508
        %v637 = vpack.c.b16 %v517, %v513
        %v638 = vpack.c.b16 %v518, %v514
        %v639 = vpack.c.b16 %v519, %v515
        %v640 = vpack.c.b16 %v520, %v516
        %v641 = vpack.c.b16 %v525, %v521
        %v642 = vpack.c.b16 %v526, %v522
        %v643 = vpack.c.b16 %v527, %v523
        %v644 = vpack.c.b16 %v528, %v524
        %v645 = vpack.c.b16 %v533, %v529
        %v646 = vpack.c.b16 %v534, %v530
        %v647 = vpack.c.b16 %v535, %v531
        %v648 = vpack.c.b16 %v536, %v532
        %v649 = vpack.c.b16 %v541, %v537
        %v650 = vpack.c.b16 %v542, %v538
        %v651 = vpack.c.b16 %v543, %v539
        %v652 = vpack.c.b16 %v544, %v540
        %v653 = vpack.c.b16 %v549, %v545
        %v654 = vpack.c.b16 %v550, %v546
        %v655 = vpack.c.b16 %v551, %v547
        %v656 = vpack.c.b16 %v552, %v548
        %v657 = vpack.c.b16 %v557, %v553
        %v658 = vpack.c.b16 %v558, %v554
        %v659 = vpack.c.b16 %v559, %v555
        %v660 = vpack.c.b16 %v560, %v556
        %v661 = vpack.c.b16 %v565, %v561
        %v662 = vpack.c.b16 %v566, %v562
        %v663 = vpack.c.b16 %v567, %v563
        %v664 = vpack.c.b16 %v568, %v564
        %v665 = vpack.c.b16 %v573, %v569
        %v666 = vpack.c.b16 %v574, %v570
        %v667 = vpack.c.b16 %v575, %v571
        %v668 = vpack.c.b16 %v576, %v572
        %v669 = vpack.c.b16 %v581, %v577
        %v670 = vpack.c.b16 %v582, %v578
        %v671 = vpack.c.b16 %v583, %v579
        %v672 = vpack.c.b16 %v584, %v580
        %v673 = vpack.c.b16 %v589, %v585
        %v674 = vpack.c.b16 %v590, %v586
        %v675 = vpack.c.b16 %v591, %v587
        %v676 = vpack.c.b16 %v592, %v588
        %v677 = vpack.c.b16 %v597, %v593
        %v678 = vpack.c.b16 %v598, %v594
        %v679 = vpack.c.b16 %v599, %v595
        %v680 = vpack.c.b16 %v600, %v596
        %v681 = vpack.c.b16 %v605, %v601
        %v682 = vpack.c.b16 %v606, %v602
        %v683 = vpack.c.b16 %v607, %v603
        %v684 = vpack.c.b16 %v608, %v604
        %v685 = vpack.c.b16 %v613, %v609
        %v686 = vpack.c.b16 %v614, %v610
        %v687 = vpack.c.b16 %v615, %v611
        %v688 = vpack.c.b16 %v616, %v612
        %v689 = vpack.c.b16 %v621, %v617
        %v690 = vpack.c.b16 %v622, %v618
        %v691 = vpack.c.b16 %v623, %v619
        %v692 = vpack.c.b16 %v624, %v620
        %v693 = vpack.c.b16 %v629, %v625
        %v694 = vpack.c.b16 %v630, %v626
        %v695 = vpack.c.b16 %v631, %v627
        %v696 = vpack.c.b16 %v632, %v628
        %761 = vmatpush.bf16.msra.mxu0 %v661
        %762 = vmatpush.bf16.msra.mxu0 %v657
        %763 = vmatpush.bf16.msra.mxu0 %v653
        %764 = vmatpush.bf16.msra.mxu0 %v649
        %765 = vmatpush.bf16.msra.mxu0 %v645
        %766 = vmatpush.bf16.msra.mxu0 %v641
        %767 = vmatpush.bf16.msra.mxu0 %v637
        %768 = vmatpush.bf16.msra.mxu0 %v633
        %769 = vmatmul.bf16.gmra.mxu0 %v375
        %v770 = vpop.f32.mrf.mxu0
        %v771 = vadd.f32 0.0, %v770
        %v772 = vpop.f32.mrf.mxu0
        %773 = vdwg.mxu0
        %774 = vmatpush.bf16.msra.mxu0 %v693
        %775 = vmatpush.bf16.msra.mxu0 %v689
        %776 = vmatpush.bf16.msra.mxu0 %v685
        %777 = vmatpush.bf16.msra.mxu0 %v681
        %778 = vmatpush.bf16.msra.mxu0 %v677
        %779 = vmatpush.bf16.msra.mxu0 %v673
        %780 = vmatpush.bf16.msra.mxu0 %v669
        %781 = vmatpush.bf16.msra.mxu0 %v665
        %782 = vmatmul.bf16.gmra.mxu0 %v376
        %v783 = vpop.f32.mrf.mxu0
        %v784 = vadd.f32 %v771, %v783
        %v785 = vpop.f32.mrf.mxu0
        %786 = vdwg.mxu0
        %787 = vmatpush.bf16.msra.mxu0 %v662
        %788 = vmatpush.bf16.msra.mxu0 %v658
        %789 = vmatpush.bf16.msra.mxu0 %v654
        %790 = vmatpush.bf16.msra.mxu0 %v650
        %791 = vmatpush.bf16.msra.mxu0 %v646
        %792 = vmatpush.bf16.msra.mxu0 %v642
        %793 = vmatpush.bf16.msra.mxu0 %v638
        %794 = vmatpush.bf16.msra.mxu0 %v634
        %795 = vmatmul.bf16.gmra.mxu0 %v375
        %v796 = vpop.f32.mrf.mxu0
        %v797 = vadd.f32 0.0, %v796
        %v798 = vpop.f32.mrf.mxu0
        %799 = vdwg.mxu0
        %800 = vmatpush.bf16.msra.mxu0 %v694
        %801 = vmatpush.bf16.msra.mxu0 %v690
        %802 = vmatpush.bf16.msra.mxu0 %v686
        %803 = vmatpush.bf16.msra.mxu0 %v682
        %804 = vmatpush.bf16.msra.mxu0 %v678
        %805 = vmatpush.bf16.msra.mxu0 %v674
        %806 = vmatpush.bf16.msra.mxu0 %v670
        %807 = vmatpush.bf16.msra.mxu0 %v666
        %808 = vmatmul.bf16.gmra.mxu0 %v376
        %v809 = vpop.f32.mrf.mxu0
        %v810 = vadd.f32 %v797, %v809
        %v811 = vpop.f32.mrf.mxu0
        %812 = vdwg.mxu0
        %813 = vmatpush.bf16.msra.mxu0 %v663
        %814 = vmatpush.bf16.msra.mxu0 %v659
        %815 = vmatpush.bf16.msra.mxu0 %v655
        %816 = vmatpush.bf16.msra.mxu0 %v651
        %817 = vmatpush.bf16.msra.mxu0 %v647
        %818 = vmatpush.bf16.msra.mxu0 %v643
        %819 = vmatpush.bf16.msra.mxu0 %v639
        %820 = vmatpush.bf16.msra.mxu0 %v635
        %821 = vmatmul.bf16.gmra.mxu0 %v375
        %v822 = vpop.f32.mrf.mxu0
        %v823 = vadd.f32 0.0, %v822
        %v824 = vpop.f32.mrf.mxu0
        %825 = vdwg.mxu0
        %826 = vmatpush.bf16.msra.mxu0 %v695
        %827 = vmatpush.bf16.msra.mxu0 %v691
        %828 = vmatpush.bf16.msra.mxu0 %v687
        %829 = vmatpush.bf16.msra.mxu0 %v683
        %830 = vmatpush.bf16.msra.mxu0 %v679
        %831 = vmatpush.bf16.msra.mxu0 %v675
        %832 = vmatpush.bf16.msra.mxu0 %v671
        %833 = vmatpush.bf16.msra.mxu0 %v667
        %834 = vmatmul.bf16.gmra.mxu0 %v376
        %v835 = vpop.f32.mrf.mxu0
        %v836 = vadd.f32 %v823, %v835
        %v837 = vpop.f32.mrf.mxu0
        %838 = vdwg.mxu0
        %839 = vmatpush.bf16.msra.mxu0 %v664
        %840 = vmatpush.bf16.msra.mxu0 %v660
        %841 = vmatpush.bf16.msra.mxu0 %v656
        %842 = vmatpush.bf16.msra.mxu0 %v652
        %843 = vmatpush.bf16.msra.mxu0 %v648
        %844 = vmatpush.bf16.msra.mxu0 %v644
        %845 = vmatpush.bf16.msra.mxu0 %v640
        %846 = vmatpush.bf16.msra.mxu0 %v636
        %847 = vmatmul.bf16.gmra.mxu0 %v375
        %v848 = vpop.f32.mrf.mxu0
        %v849 = vadd.f32 0.0, %v848
        %v850 = vpop.f32.mrf.mxu0
        %851 = vdwg.mxu0
        %852 = vmatpush.bf16.msra.mxu0 %v696
        %853 = vmatpush.bf16.msra.mxu0 %v692
        %854 = vmatpush.bf16.msra.mxu0 %v688
        %855 = vmatpush.bf16.msra.mxu0 %v684
        %856 = vmatpush.bf16.msra.mxu0 %v680
        %857 = vmatpush.bf16.msra.mxu0 %v676
        %858 = vmatpush.bf16.msra.mxu0 %v672
        %859 = vmatpush.bf16.msra.mxu0 %v668
        %860 = vmatmul.bf16.gmra.mxu0 %v376
        %v861 = vpop.f32.mrf.mxu0
        %v862 = vadd.f32 %v849, %v861
        %v863 = vpop.f32.mrf.mxu0
        %864 = vdwg.mxu0
        %v865 = vmul.f32 %v784, 0.5
        %v866 = vtanh.pop %v865
        %v867 = vmul.f32 %v866, 0.5
        %v868 = vadd.f32 %v867, 0.5
        %v869 = vmul.f32 %v810, 0.5
        %v870 = vtanh.pop %v869
        %v871 = vmul.f32 %v870, 0.5
        %v872 = vadd.f32 %v871, 0.5
        %v873 = vmul.f32 %v862, 0.5
        %v874 = vtanh.pop %v873
        %v875 = vmul.f32 %v874, 0.5
        %v876 = vadd.f32 %v875, 0.5
        %v877 = vld [vmem:[#allocation9] sm:$0xff]
        %vm878 = vcmask 64512
        %v880 = vsel %vm878, %v877, 0
        %882 = vmatpush.msra.mxu0 0.0
        %883 = vmatpush.msra.mxu0 0.0
        %884 = vmatpush.msra.mxu0 0.0
        %885 = vmatpush.msra.mxu0 0.0
        %886 = vmatpush.msra.mxu0 0.0
        %887 = vmatpush.msra.mxu0 0.0
        %888 = vmatpush.msra.mxu0 0.0
        %889 = vmatpush.msra.mxu0 0.0
        %890 = vmatpush.msra.mxu0 0.0
        %891 = vmatpush.msra.mxu0 0.0
        %892 = vmatpush.msra.mxu0 0.0
        %893 = vmatpush.msra.mxu0 0.0
        %894 = vmatpush.msra.mxu0 0.0
        %895 = vmatpush.msra.mxu0 0.0
        %896 = vmatpush.msra.mxu0 0.0
        %897 = vmatpush.msra.mxu0 %v836
        %898 = vmatmul.f32.gmra.mxu0 %v880
        %v899 = vpop.f32.mrf.mxu0
        %v900 = vadd.f32 0.0, %v899
        %901 = vdwg.mxu0
        %v902 = vtanh.pop %v900
        %v903 = vmul.f32 %v872, %v374
        %v904 = vmul.f32 %v868, %v902
        %v905 = vadd.f32 %v903, %v904
        %v906 = vtanh.pop %v905
        %v907 = vmul.f32 %v876, %v906
        %908 = vst [vmem:[#allocation3] sm:$0xff] %v905
        %909 = vst [vmem:[#allocation2] sm:$0xff] %v907
        %v910 = vpack.c.bf16 %v907, %v907
        %v911 = vld [vmem:[#allocation10] sm:$0xf]
        %v912 = vld [vmem:[#allocation10 + $0x4] sm:$0xf]
        %v913 = vld [vmem:[#allocation10 + $0x8] sm:$0xf]
        %v914 = vld [vmem:[#allocation10 + $0xc] sm:$0xf]
        %v915 = vld [vmem:[#allocation10 + $0x10] sm:$0xf]
        %v916 = vld [vmem:[#allocation10 + $0x14] sm:$0xf]
        %v917 = vld [vmem:[#allocation10 + $0x18] sm:$0xf]
        %v918 = vld [vmem:[#allocation10 + $0x1c] sm:$0xf]
        %v919 = vld [vmem:[#allocation10 + $0x20] sm:$0xf]
        %v920 = vld [vmem:[#allocation10 + $0x24] sm:$0xf]
        %v921 = vld [vmem:[#allocation10 + $0x28] sm:$0xf]
        %v922 = vld [vmem:[#allocation10 + $0x2c] sm:$0xf]
        %v923 = vld [vmem:[#allocation10 + $0x30] sm:$0xf]
        %v924 = vld [vmem:[#allocation10 + $0x34] sm:$0xf]
        %v925 = vld [vmem:[#allocation10 + $0x38] sm:$0xf]
        %v926 = vld [vmem:[#allocation10 + $0x3c] sm:$0xf]
        %v943 = vunpack.c.l.b16 %v911
        %v944 = vunpack.c.l.b16 %v912
        %v945 = vunpack.c.l.b16 %v913
        %v946 = vunpack.c.l.b16 %v914
        %v947 = vunpack.c.l.b16 %v915
        %v948 = vunpack.c.l.b16 %v916
        %v949 = vunpack.c.l.b16 %v917
        %v950 = vunpack.c.l.b16 %v918
        %v951 = vunpack.c.l.b16 %v919
        %v952 = vunpack.c.l.b16 %v920
        %v953 = vunpack.c.l.b16 %v921
        %v954 = vunpack.c.l.b16 %v922
        %v955 = vunpack.c.l.b16 %v923
        %v956 = vunpack.c.l.b16 %v924
        %v957 = vunpack.c.l.b16 %v925
        %v958 = vunpack.c.l.b16 %v926
        %v959 = vpack.c.b16 %v944, %v943
        %v960 = vpack.c.b16 %v946, %v945
        %v961 = vpack.c.b16 %v948, %v947
        %v962 = vpack.c.b16 %v950, %v949
        %v963 = vpack.c.b16 %v952, %v951
        %v964 = vpack.c.b16 %v954, %v953
        %v965 = vpack.c.b16 %v956, %v955
        %v966 = vpack.c.b16 %v958, %v957
        %975 = vmatpush.bf16.msra.mxu0 %v966
        %976 = vmatpush.bf16.msra.mxu0 %v965
        %977 = vmatpush.bf16.msra.mxu0 %v964
        %978 = vmatpush.bf16.msra.mxu0 %v963
        %979 = vmatpush.bf16.msra.mxu0 %v962
        %980 = vmatpush.bf16.msra.mxu0 %v961
        %981 = vmatpush.bf16.msra.mxu0 %v960
        %982 = vmatpush.bf16.msra.mxu0 %v959
        %983 = vmatmul.bf16.gmra.mxu0 %v910
        %v984 = vpop.f32.mrf.mxu0
        %v985 = vadd.f32 0.0, %v984
        %v986 = vpop.f32.mrf.mxu0
        %987 = vdwg.mxu0
        %988 = vst [vmem:[%s363] sm:$0xff] %v985
        %s989 = sand.u32 %s181, 1
        %s990 = scalar_lea.sflag [#allocation6], %s989
        %s991 = sand.u32 %s181, 1
        %s992 = smul.addr %s991, 8
        %s993 = scalar_lea.vmem [#allocation15], %s992
        // Predicated region
        $region73: #{tpu_custom_call.1} parent=43 // pred_check
          %p994 = pneg %p191
        $region74: #{tpu_custom_call.1} parent=43 // pred_check_branch
          %996 = sbr.rel (%p994) target = $region76
        $region75: #{tpu_custom_call.1} parent=43 // pred_region
          %998 = vsyncadd %s990, 0
          %s999 = smul.addr %s30, 4
          %s1000 = sadd.s32 %s31, %s999
          %s1001 = smul.addr %s1000, 8
          %s1002 = scalar_lea.hbm %s6, %s1001
          %s1004 = sshll.u32 %s993, 4
          %s1005 = int_to_ptr.vmem [resolvable:$true] %s1004
          %s1006 = sshll.u32 %s1002, 4
          %s1007 = int_to_ptr.hbm [resolvable:$true] %s1006
          %1009 = dma.vmem_to_hbm [thread:$0]  %s1005, 128, %s1007, %s990
        $region76: #{tpu_custom_call.1} parent=43 // pred_fallthru
          _
      $region44: #{tpu_custom_call.1} parent=5 // pred_fallthru
        _
      %p1010 = scmp.le.s32.totalorder 2, %s21
      // Predicated region
      $region77: #{tpu_custom_call.1} parent=5 // pred_check
        %p1011 = pneg %p1010
      $region78: #{tpu_custom_call.1} parent=5 // pred_check_branch
        %1013 = sbr.rel (%p1011) target = $region80
      $region79: #{tpu_custom_call.1} parent=5 // pred_region
        %s1014 = ssub.s32 %s21, 2
        // Predicated region
        $region81: #{tpu_custom_call.1} parent=79 // pred_check
          %p1015 = pneg %p197
        $region82: #{tpu_custom_call.1} parent=79 // pred_check_branch
          %1017 = sbr.rel (%p1015) target = $region84
        $region83: #{tpu_custom_call.1} parent=79 // pred_region
          %s1018 = sand.u32 %s182, 1
          %s1019 = scalar_lea.sflag [#allocation6], %s1018
          %s1020 = sand.u32 %s182, 1
          %s1021 = smul.addr %s1020, 8
          %s1022 = scalar_lea.vmem [#allocation15], %s1021
          %1024 = dma.done %s1019, 128
        $region84: #{tpu_custom_call.1} parent=79 // pred_fallthru
          _
      $region80: #{tpu_custom_call.1} parent=5 // pred_fallthru
        _
    $region6: #{tpu_custom_call.1} parent=1 // loop_footer
      %s25 = sadd.s32 1, %s21
    $region7: #{tpu_custom_call.1} parent=1 // loop_footer_branch
      %20 = sbr.rel target = $region3
    $region8: #{tpu_custom_call.1} parent=1 // loop_exit
      _
    %1025 = vsyncpa [#allocation5], 1
    %s1026 = scalar_lea.sflag [#allocation5], 1
    %1027 = vsyncpa %s1026, 1
    %1028 = vsyncpa [#allocation8], 1
    %1029 = vsyncpa [#allocation11], 1
    %1030 = vsyncpa [#allocation14], 1
    %1031 = vsyncpa [#allocation6], 1
    %s1032 = scalar_lea.sflag [#allocation6], 1
    %1033 = vsyncpa %s1032, 1

// kernel: tpu_custom_call.1
$region0: #{tpu_custom_call.1}
  #allocation0 [shape = 'u32[]', space=smem, size = 0x4, offset = 0x4, fixed_abs, tag = 'smem constant byte address 0x4 - core index']
  #allocation1 [shape = 'u32[72,128]{1,0:T(1,128)}', space=vmem, size = 0x9000, scoped, tag = 'internal scratch']
  #allocation2 [shape = 'f32[8,128]{1,0:T(8,128)}', space=vmem, size = 0x1000, scoped, tag = 'scratch operand']
  #allocation3 [shape = 'f32[8,128]{1,0:T(8,128)}', space=vmem, size = 0x1000, scoped, tag = 'scratch operand']
  %s0 = inlined_call_operand.hbm [shape: f32[2,32,128], index: 0, kind: input, shape index: {}]
  %s1 = inlined_call_operand.hbm [shape: bf16[256,512], index: 1, kind: input, shape index: {}]
  %s2 = inlined_call_operand.hbm [shape: f32[8,8], index: 2, kind: input, shape index: {}]
  %s3 = inlined_call_operand.hbm [shape: bf16[128,128], index: 3, kind: input, shape index: {}]
  %s4 = inlined_call_operand.hbm [shape: f32[8,128], index: 4, kind: input, shape index: {}]
  %s5 = inlined_call_operand.hbm [shape: f32[8,128], index: 5, kind: input, shape index: {}]
  %s6 = inlined_call_operand.hbm [shape: f32[2,32,128], index: 6, kind: output, shape index: {}]
  %s7 = sld [smem:[#allocation0]]
  $region85: #{tpu_custom_call.1} parent=0
    _
  %s9 = ssub.s32 1, %s7
  %s10 = scalar_select 0, %s9, %s7
  $region1: #{tpu_custom_call.1} parent=0
    #allocation4 [shape = 'u8[8192]{0}', space=vmem, size = 0x2000, scoped, tag = 'input window, operand 0']
    #allocation5 [shape = 's32[2]{0}', space=sflag, size = 0x8, scoped, tag = 'scoped memory for tpu_custom_call.1']
    #allocation6 [shape = 's32[2]{0}', space=sflag, size = 0x8, scoped, tag = 'scoped memory for tpu_custom_call.1']
    #allocation7 [shape = 'u8[262144]{0}', space=vmem, size = 0x40000, scoped, tag = 'input window, operand 1, single buffered']
    #allocation8 [shape = 's32[1]{0}', space=sflag, size = 0x4, scoped, tag = 'scoped memory for tpu_custom_call.1']
    #allocation9 [shape = 'u8[4096]{0}', space=vmem, size = 0x1000, scoped, tag = 'input window, operand 2, single buffered']
    #allocation10 [shape = 'u8[32768]{0}', space=vmem, size = 0x8000, scoped, tag = 'input window, operand 3, single buffered']
    #allocation11 [shape = 's32[1]{0}', space=sflag, size = 0x4, scoped, tag = 'scoped memory for tpu_custom_call.1']
    #allocation12 [shape = 'u8[4096]{0}', space=vmem, size = 0x1000, scoped, tag = 'input window, operand 4, single buffered']
    #allocation13 [shape = 'u8[4096]{0}', space=vmem, size = 0x1000, scoped, tag = 'input window, operand 5, single buffered']
    #allocation14 [shape = 's32[1]{0}', space=sflag, size = 0x4, scoped, tag = 'scoped memory for tpu_custom_call.1']
    #allocation15 [shape = 'u8[8192]{0}', space=vmem, size = 0x2000, scoped, tag = 'output window, operand 0']
    %11 = vsyncpa [#allocation5], 0
    %s12 = scalar_lea.sflag [#allocation5], 1
    %13 = vsyncpa %s12, 0
    %14 = vsyncpa [#allocation8], 0
    %15 = vsyncpa [#allocation11], 0
    %16 = vsyncpa [#allocation14], 0
    %17 = vsyncpa [#allocation6], 0
    %s18 = scalar_lea.sflag [#allocation6], 1
    %19 = vsyncpa %s18, 0
    loop: start=0, step=1, limit=10
    $region2: #{tpu_custom_call.1} parent=1 // loop_pre_header
      _
    $region3: #{tpu_custom_call.1} parent=1 // loop_header
      %s21 = sphi 0, %s25
      %p22 = scmp.ge.s32.totalorder %s21, 10
      %s28 = sphi 0, %s40
      %s29 = sphi 0, %s36
      %s30 = sphi 0, %s28
      %s31 = sphi 0, %s29
      %s32 = sphi 0, %s30
      %s33 = sphi 0, %s31
      %s45 = sphi 0, %s47
      %s48 = sphi 0, %s45
      %s49 = sphi 0, %s48
      %s65 = sphi 0, %s49
      %s69 = sphi 0, %s69
      %s71 = sphi 0, %s69
      %s72 = sphi 0, %s71
      %s86 = sphi 0, %s72
      %s90 = sphi 0, %s90
      %s92 = sphi 0, %s90
      %s93 = sphi 0, %s92
      %s107 = sphi 0, %s93
      %s111 = sphi 0, %s111
      %s113 = sphi 0, %s111
      %s114 = sphi 0, %s113
      %s128 = sphi 0, %s114
      %s132 = sphi 0, %s132
      %s134 = sphi 0, %s132
      %s135 = sphi 0, %s134
      %s149 = sphi 0, %s135
      %s153 = sphi 0, %s153
      %s155 = sphi 0, %s153
      %s156 = sphi 0, %s155
      %s170 = sphi 0, %s156
      %s178 = sphi 0, %s180
      %s181 = sphi 0, %s178
      %s182 = sphi 0, %s181
      %s198 = sphi 0, %s182
    $region4: #{tpu_custom_call.1} parent=1 // loop_header_branch
      %24 = sbr.rel (%p22) target = $region8
    $region5: #{tpu_custom_call.1} parent=1 // loop_body
      %s26 = ssub.s32 %s21, 1
      %s27 = ssub.s32 %s21, 2
      %s34 = sadd.s32 1, %s29
      %p35 = scmp.ge.s32.totalorder %s34, 4
      %s36 = scalar_select %p35, 0, %s34
      %s37 = sadd.s32 1, %s28
      %s38 = scalar_select %p35, %s37, %s28
      %p39 = scmp.ge.s32.totalorder %s38, 2
      %s40 = scalar_select %p39, 0, %s38
      %s41 = ssub.s32 %s28, %s40
      %s42 = ssub.s32 %s29, %s36
      %s43 = sor.u32 %s41, %s42
      %p44 = scmp.eq.s32.totalorder %s43, 0
      %s46 = sadd.s32 %s45, 1
      %s47 = scalar_select %p44, %s45, %s46
      %p50 = pneg %p44
      %p51 = scmp.eq.s32.totalorder %s21, 7
      %p52 = por %p50, %p51
      %p53 = scmp.ne.s32.totalorder %s45, %s48
      %p54 = scmp.eq.s32.totalorder %s21, 0
      %p55 = por %p53, %p54
      %p56 = scmp.ne.s32.totalorder %s45, %s48
      %p57 = scmp.eq.s32.totalorder %s26, 7
      %p58 = por %p56, %p57
      %p59 = scmp.ne.s32.totalorder %s48, %s49
      %p60 = scmp.eq.s32.totalorder %s26, 0
      %p61 = por %p59, %p60
      %p62 = scmp.ne.s32.totalorder %s48, %s49
      %p63 = scmp.eq.s32.totalorder %s27, 7
      %p64 = por %p62, %p63
      %p66 = scmp.ne.s32.totalorder %s49, %s65
      %p67 = scmp.eq.s32.totalorder %s27, 0
      %p68 = por %p66, %p67
      %s70 = sadd.s32 %s69, 1
      %p73 = scmp.eq.s32.totalorder %s21, 7
      %p74 = scmp.ne.s32.totalorder %s69, %s71
      %p75 = scmp.eq.s32.totalorder %s21, 0
      %p76 = por %p74, %p75
      %p77 = scmp.ne.s32.totalorder %s69, %s71
      %p78 = scmp.eq.s32.totalorder %s26, 7
      %p79 = por %p77, %p78
      %p80 = scmp.ne.s32.totalorder %s71, %s72
      %p81 = scmp.eq.s32.totalorder %s26, 0
      %p82 = por %p80, %p81
      %p83 = scmp.ne.s32.totalorder %s71, %s72
      %p84 = scmp.eq.s32.totalorder %s27, 7
      %p85 = por %p83, %p84
      %p87 = scmp.ne.s32.totalorder %s72, %s86
      %p88 = scmp.eq.s32.totalorder %s27, 0
      %p89 = por %p87, %p88
      %s91 = sadd.s32 %s90, 1
      %p94 = scmp.eq.s32.totalorder %s21, 7
      %p95 = scmp.ne.s32.totalorder %s90, %s92
      %p96 = scmp.eq.s32.totalorder %s21, 0
      %p97 = por %p95, %p96
      %p98 = scmp.ne.s32.totalorder %s90, %s92
      %p99 = scmp.eq.s32.totalorder %s26, 7
      %p100 = por %p98, %p99
      %p101 = scmp.ne.s32.totalorder %s92, %s93
      %p102 = scmp.eq.s32.totalorder %s26, 0
      %p103 = por %p101, %p102
      %p104 = scmp.ne.s32.totalorder %s92, %s93
      %p105 = scmp.eq.s32.totalorder %s27, 7
      %p106 = por %p104, %p105
      %p108 = scmp.ne.s32.totalorder %s93, %s107
      %p109 = scmp.eq.s32.totalorder %s27, 0
      %p110 = por %p108, %p109
      %s112 = sadd.s32 %s111, 1
      %p115 = scmp.eq.s32.totalorder %s21, 7
      %p116 = scmp.ne.s32.totalorder %s111, %s113
      %p117 = scmp.eq.s32.totalorder %s21, 0
      %p118 = por %p116, %p117
      %p119 = scmp.ne.s32.totalorder %s111, %s113
      %p120 = scmp.eq.s32.totalorder %s26, 7
      %p121 = por %p119, %p120
      %p122 = scmp.ne.s32.totalorder %s113, %s114
      %p123 = scmp.eq.s32.totalorder %s26, 0
      %p124 = por %p122, %p123
      %p125 = scmp.ne.s32.totalorder %s113, %s114
      %p126 = scmp.eq.s32.totalorder %s27, 7
      %p127 = por %p125, %p126
      %p129 = scmp.ne.s32.totalorder %s114, %s128
      %p130 = scmp.eq.s32.totalorder %s27, 0
      %p131 = por %p129, %p130
      %s133 = sadd.s32 %s132, 1
      %p136 = scmp.eq.s32.totalorder %s21, 7
      %p137 = scmp.ne.s32.totalorder %s132, %s134
      %p138 = scmp.eq.s32.totalorder %s21, 0
      %p139 = por %p137, %p138
      %p140 = scmp.ne.s32.totalorder %s132, %s134
      %p141 = scmp.eq.s32.totalorder %s26, 7
      %p142 = por %p140, %p141
      %p143 = scmp.ne.s32.totalorder %s134, %s135
      %p144 = scmp.eq.s32.totalorder %s26, 0
      %p145 = por %p143, %p144
      %p146 = scmp.ne.s32.totalorder %s134, %s135
      %p147 = scmp.eq.s32.totalorder %s27, 7
      %p148 = por %p146, %p147
      %p150 = scmp.ne.s32.totalorder %s135, %s149
      %p151 = scmp.eq.s32.totalorder %s27, 0
      %p152 = por %p150, %p151
      %s154 = sadd.s32 %s153, 1
      %p157 = scmp.eq.s32.totalorder %s21, 7
      %p158 = scmp.ne.s32.totalorder %s153, %s155
      %p159 = scmp.eq.s32.totalorder %s21, 0
      %p160 = por %p158, %p159
      %p161 = scmp.ne.s32.totalorder %s153, %s155
      %p162 = scmp.eq.s32.totalorder %s26, 7
      %p163 = por %p161, %p162
      %p164 = scmp.ne.s32.totalorder %s155, %s156
      %p165 = scmp.eq.s32.totalorder %s26, 0
      %p166 = por %p164, %p165
      %p167 = scmp.ne.s32.totalorder %s155, %s156
      %p168 = scmp.eq.s32.totalorder %s27, 7
      %p169 = por %p167, %p168
      %p171 = scmp.ne.s32.totalorder %s156, %s170
      %p172 = scmp.eq.s32.totalorder %s27, 0
      %p173 = por %p171, %p172
      %s174 = ssub.s32 %s28, %s40
      %s175 = ssub.s32 %s29, %s36
      %s176 = sor.u32 %s174, %s175
      %p177 = scmp.eq.s32.totalorder %s176, 0
      %s179 = sadd.s32 %s178, 1
      %s180 = scalar_select %p177, %s178, %s179
      %p183 = pneg %p177
      %p184 = scmp.eq.s32.totalorder %s21, 7
      %p185 = por %p183, %p184
      %p186 = scmp.ne.s32.totalorder %s178, %s181
      %p187 = scmp.eq.s32.totalorder %s21, 0
      %p188 = por %p186, %p187
      %p189 = scmp.ne.s32.totalorder %s178, %s181
      %p190 = scmp.eq.s32.totalorder %s26, 7
      %p191 = por %p189, %p190
      %p192 = scmp.ne.s32.totalorder %s181, %s182
      %p193 = scmp.eq.s32.totalorder %s26, 0
      %p194 = por %p192, %p193
      %p195 = scmp.ne.s32.totalorder %s181, %s182
      %p196 = scmp.eq.s32.totalorder %s27, 7
      %p197 = por %p195, %p196
      %p199 = scmp.ne.s32.totalorder %s182, %s198
      %p200 = scmp.eq.s32.totalorder %s27, 0
      %p201 = por %p199, %p200
      %p202 = scmp.le.s32.totalorder 1, %s21
      %p203 = scmp.lt.s32.totalorder %s21, 9
      %p204 = pnand %p202, %p203
      %p205 = pneg %p204
      // Predicated region
      $region9: #{tpu_custom_call.1} parent=5 // pred_check
        _
      $region10: #{tpu_custom_call.1} parent=5 // pred_check_branch
        %207 = sbr.rel (%p204) target = $region12
      $region11: #{tpu_custom_call.1} parent=5 // pred_region
        %s208 = ssub.s32 %s21, 1
        // Predicated region
        $region13: #{tpu_custom_call.1} parent=11 // pred_check
          %p209 = pneg %p82
        $region14: #{tpu_custom_call.1} parent=11 // pred_check_branch
          %211 = sbr.rel (%p209) target = $region16
        $region15: #{tpu_custom_call.1} parent=11 // pred_region
          %213 = vsyncadd [#allocation8], 0
          %s214 = sshll.u32 %s1, 4
          %s215 = int_to_ptr.hbm [resolvable:$true] %s214
          %s216 = sshll.u32 [#allocation7], 4
          %s217 = int_to_ptr.vmem [resolvable:$true] %s216
          %222 = dma.hbm_to_vmem [thread:$0]  %s215, 8192, %s217, [#allocation8], 256, 256, 16
        $region16: #{tpu_custom_call.1} parent=11 // pred_fallthru
          _
        // Predicated region
        $region17: #{tpu_custom_call.1} parent=11 // pred_check
          %p223 = pneg %p103
        $region18: #{tpu_custom_call.1} parent=11 // pred_check_branch
          %225 = sbr.rel (%p223) target = $region20
        $region19: #{tpu_custom_call.1} parent=11 // pred_region
          %227 = vsyncadd [#allocation8], 0
          %s229 = sshll.u32 %s2, 4
          %s230 = int_to_ptr.hbm [resolvable:$true] %s229
          %s231 = sshll.u32 [#allocation9], 4
          %s232 = int_to_ptr.vmem [resolvable:$true] %s231
          %234 = dma.hbm_to_vmem [thread:$0]  %s230, 128, %s232, [#allocation8]
        $region20: #{tpu_custom_call.1} parent=11 // pred_fallthru
          _
        // Predicated region
        $region21: #{tpu_custom_call.1} parent=11 // pred_check
          %p235 = pneg %p124
        $region22: #{tpu_custom_call.1} parent=11 // pred_check_branch
          %237 = sbr.rel (%p235) target = $region24
        $region23: #{tpu_custom_call.1} parent=11 // pred_region
          %239 = vsyncadd [#allocation11], 0
          %s240 = sshll.u32 %s3, 4
          %s241 = int_to_ptr.hbm [resolvable:$true] %s240
          %s242 = sshll.u32 [#allocation10], 4
          %s243 = int_to_ptr.vmem [resolvable:$true] %s242
          %248 = dma.hbm_to_vmem [thread:$0]  %s241, 1024, %s243, [#allocation11], 64, 64, 4
        $region24: #{tpu_custom_call.1} parent=11 // pred_fallthru
          _
        // Predicated region
        $region25: #{tpu_custom_call.1} parent=11 // pred_check
          %p249 = pneg %p145
        $region26: #{tpu_custom_call.1} parent=11 // pred_check_branch
          %251 = sbr.rel (%p249) target = $region28
        $region27: #{tpu_custom_call.1} parent=11 // pred_region
          %253 = vsyncadd [#allocation11], 0
          %s255 = sshll.u32 %s4, 4
          %s256 = int_to_ptr.hbm [resolvable:$true] %s255
          %s257 = sshll.u32 [#allocation12], 4
          %s258 = int_to_ptr.vmem [resolvable:$true] %s257
          %260 = dma.hbm_to_vmem [thread:$0]  %s256, 128, %s258, [#allocation11]
        $region28: #{tpu_custom_call.1} parent=11 // pred_fallthru
          _
        // Predicated region
        $region29: #{tpu_custom_call.1} parent=11 // pred_check
          %p261 = pneg %p166
        $region30: #{tpu_custom_call.1} parent=11 // pred_check_branch
          %263 = sbr.rel (%p261) target = $region32
        $region31: #{tpu_custom_call.1} parent=11 // pred_region
          %265 = vsyncadd [#allocation14], 0
          %s267 = sshll.u32 %s5, 4
          %s268 = int_to_ptr.hbm [resolvable:$true] %s267
          %s269 = sshll.u32 [#allocation13], 4
          %s270 = int_to_ptr.vmem [resolvable:$true] %s269
          %272 = dma.hbm_to_vmem [thread:$0]  %s268, 128, %s270, [#allocation14]
        $region32: #{tpu_custom_call.1} parent=11 // pred_fallthru
          _
      $region12: #{tpu_custom_call.1} parent=5 // pred_fallthru
        _
      %p273 = scmp.lt.s32.totalorder %s21, 8
      // Predicated region
      $region33: #{tpu_custom_call.1} parent=5 // pred_check
        %p274 = pneg %p273
      $region34: #{tpu_custom_call.1} parent=5 // pred_check_branch
        %276 = sbr.rel (%p274) target = $region36
      $region35: #{tpu_custom_call.1} parent=5 // pred_region
        // Predicated region
        $region37: #{tpu_custom_call.1} parent=35 // pred_check
          %p277 = pneg %p55
        $region38: #{tpu_custom_call.1} parent=35 // pred_check_branch
          %279 = sbr.rel (%p277) target = $region40
        $region39: #{tpu_custom_call.1} parent=35 // pred_region
          %s280 = sand.u32 %s45, 1
          %s281 = scalar_lea.sflag [#allocation5], %s280
          %s282 = sand.u32 %s45, 1
          %s283 = smul.addr %s282, 8
          %s284 = scalar_lea.vmem [#allocation4], %s283
          %286 = vsyncadd %s281, 0
          %s287 = smul.addr %s28, 4
          %s288 = sadd.s32 %s29, %s287
          %s289 = smul.addr %s288, 8
          %s290 = scalar_lea.hbm %s0, %s289
          %s292 = sshll.u32 %s290, 4
          %s293 = int_to_ptr.hbm [resolvable:$true] %s292
          %s294 = sshll.u32 %s284, 4
          %s295 = int_to_ptr.vmem [resolvable:$true] %s294
          %297 = dma.hbm_to_vmem [thread:$0]  %s293, 128, %s295, %s281
        $region40: #{tpu_custom_call.1} parent=35 // pred_fallthru
          _
      $region36: #{tpu_custom_call.1} parent=5 // pred_fallthru
        _
      %p298 = scmp.le.s32.totalorder 1, %s21
      %p299 = scmp.lt.s32.totalorder %s21, 9
      %p300 = pnand %p298, %p299
      %p301 = pneg %p300
      // Predicated region
      $region41: #{tpu_custom_call.1} parent=5 // pred_check
        _
      $region42: #{tpu_custom_call.1} parent=5 // pred_check_branch
        %303 = sbr.rel (%p300) target = $region44
      $region43: #{tpu_custom_call.1} parent=5 // pred_region
        %s304 = ssub.s32 %s21, 1
        %s305 = sand.u32 %s48, 1
        %s306 = scalar_lea.sflag [#allocation5], %s305
        %s307 = sand.u32 %s48, 1
        %s308 = smul.addr %s307, 8
        %s309 = scalar_lea.vmem [#allocation4], %s308
        // Predicated region
        $region45: #{tpu_custom_call.1} parent=43 // pred_check
          %p310 = pneg %p61
        $region46: #{tpu_custom_call.1} parent=43 // pred_check_branch
          %312 = sbr.rel (%p310) target = $region48
        $region47: #{tpu_custom_call.1} parent=43 // pred_region
          %314 = dma.done %s306, 128
        $region48: #{tpu_custom_call.1} parent=43 // pred_fallthru
          _
        // Predicated region
        $region49: #{tpu_custom_call.1} parent=43 // pred_check
          %p315 = pneg %p82
        $region50: #{tpu_custom_call.1} parent=43 // pred_check_branch
          %317 = sbr.rel (%p315) target = $region52
        $region51: #{tpu_custom_call.1} parent=43 // pred_region
          %319 = dma.done [#allocation8], 8192
        $region52: #{tpu_custom_call.1} parent=43 // pred_fallthru
          _
        // Predicated region
        $region53: #{tpu_custom_call.1} parent=43 // pred_check
          %p320 = pneg %p103
        $region54: #{tpu_custom_call.1} parent=43 // pred_check_branch
          %322 = sbr.rel (%p320) target = $region56
        $region55: #{tpu_custom_call.1} parent=43 // pred_region
          %324 = dma.done [#allocation8], 128
        $region56: #{tpu_custom_call.1} parent=43 // pred_fallthru
          _
        // Predicated region
        $region57: #{tpu_custom_call.1} parent=43 // pred_check
          %p325 = pneg %p124
        $region58: #{tpu_custom_call.1} parent=43 // pred_check_branch
          %327 = sbr.rel (%p325) target = $region60
        $region59: #{tpu_custom_call.1} parent=43 // pred_region
          %329 = dma.done [#allocation11], 1024
        $region60: #{tpu_custom_call.1} parent=43 // pred_fallthru
          _
        // Predicated region
        $region61: #{tpu_custom_call.1} parent=43 // pred_check
          %p330 = pneg %p145
        $region62: #{tpu_custom_call.1} parent=43 // pred_check_branch
          %332 = sbr.rel (%p330) target = $region64
        $region63: #{tpu_custom_call.1} parent=43 // pred_region
          %334 = dma.done [#allocation11], 128
        $region64: #{tpu_custom_call.1} parent=43 // pred_fallthru
          _
        // Predicated region
        $region65: #{tpu_custom_call.1} parent=43 // pred_check
          %p335 = pneg %p166
        $region66: #{tpu_custom_call.1} parent=43 // pred_check_branch
          %337 = sbr.rel (%p335) target = $region68
        $region67: #{tpu_custom_call.1} parent=43 // pred_region
          %339 = dma.done [#allocation14], 128
        $region68: #{tpu_custom_call.1} parent=43 // pred_fallthru
          _
        %s340 = sand.u32 %s48, 1
        %s341 = scalar_lea.sflag [#allocation5], %s340
        %s342 = sand.u32 %s48, 1
        %s343 = smul.addr %s342, 8
        %s344 = scalar_lea.vmem [#allocation4], %s343
        %p345 = pneg %p61
        %p346 = pneg %p58
        %p347 = pneg %p82
        %p348 = pneg %p79
        %p349 = pneg %p103
        %p350 = pneg %p100
        %p351 = pneg %p124
        %p352 = pneg %p121
        %p353 = pneg %p145
        %p354 = pneg %p142
        %p355 = pneg %p166
        %p356 = pneg %p163
        %p357 = pneg %p194
        %p358 = pneg %p191
        %s359 = sand.u32 %s181, 1
        %s360 = scalar_lea.sflag [#allocation6], %s359
        %s361 = sand.u32 %s181, 1
        %s362 = smul.addr %s361, 8
        %s363 = scalar_lea.vmem [#allocation15], %s362
        %p364 = scmp.eq.s32.totalorder %s31, 0
        // Predicated region
        $region69: #{tpu_custom_call.1} parent=43 // pred_check
          %p365 = pneg %p364
        $region70: #{tpu_custom_call.1} parent=43 // pred_check_branch
          %367 = sbr.rel (%p365) target = $region72
        $region71: #{tpu_custom_call.1} parent=43 // pred_region
          %v368 = vld [vmem:[#allocation12] sm:$0xff]
          %369 = vst [vmem:[#allocation2] sm:$0xff] %v368
          %v370 = vld [vmem:[#allocation13] sm:$0xff]
          %371 = vst [vmem:[#allocation3] sm:$0xff] %v370
        $region72: #{tpu_custom_call.1} parent=43 // pred_fallthru
          _
        %v372 = vld [vmem:[%s309] sm:$0xff]
        %v373 = vld [vmem:[#allocation2] sm:$0xff]
        %v374 = vld [vmem:[#allocation3] sm:$0xff]
        %v375 = vpack.c.bf16 %v372, %v372
        %v376 = vpack.c.bf16 %v373, %v373
        %v377 = vld [vmem:[#allocation7] sm:$0xff]
        %v378 = vld [vmem:[#allocation7 + $0x8] sm:$0xff]
        %v379 = vld [vmem:[#allocation7 + $0x10] sm:$0xff]
        %v380 = vld [vmem:[#allocation7 + $0x18] sm:$0xff]
        %v381 = vld [vmem:[#allocation7 + $0x20] sm:$0xff]
        %v382 = vld [vmem:[#allocation7 + $0x28] sm:$0xff]
        %v383 = vld [vmem:[#allocation7 + $0x30] sm:$0xff]
        %v384 = vld [vmem:[#allocation7 + $0x38] sm:$0xff]
        %v385 = vld [vmem:[#allocation7 + $0x40] sm:$0xff]
        %v386 = vld [vmem:[#allocation7 + $0x48] sm:$0xff]
        %v387 = vld [vmem:[#allocation7 + $0x50] sm:$0xff]
        %v388 = vld [vmem:[#allocation7 + $0x58] sm:$0xff]
        %v389 = vld [vmem:[#allocation7 + $0x60] sm:$0xff]
        %v390 = vld [vmem:[#allocation7 + $0x68] sm:$0xff]
        %v391 = vld [vmem:[#allocation7 + $0x70] sm:$0xff]
        %v392 = vld [vmem:[#allocation7 + $0x78] sm:$0xff]
        %v393 = vld [vmem:[#allocation7 + $0x80] sm:$0xff]
        %v394 = vld [vmem:[#allocation7 + $0x88] sm:$0xff]
        %v395 = vld [vmem:[#allocation7 + $0x90] sm:$0xff]
        %v396 = vld [vmem:[#allocation7 + $0x98] sm:$0xff]
        %v397 = vld [vmem:[#allocation7 + $0xa0] sm:$0xff]
        %v398 = vld [vmem:[#allocation7 + $0xa8] sm:$0xff]
        %v399 = vld [vmem:[#allocation7 + $0xb0] sm:$0xff]
        %v400 = vld [vmem:[#allocation7 + $0xb8] sm:$0xff]
        %v401 = vld [vmem:[#allocation7 + $0xc0] sm:$0xff]
        %v402 = vld [vmem:[#allocation7 + $0xc8] sm:$0xff]
        %v403 = vld [vmem:[#allocation7 + $0xd0] sm:$0xff]
        %v404 = vld [vmem:[#allocation7 + $0xd8] sm:$0xff]
        %v405 = vld [vmem:[#allocation7 + $0xe0] sm:$0xff]
        %v406 = vld [vmem:[#allocation7 + $0xe8] sm:$0xff]
        %v407 = vld [vmem:[#allocation7 + $0xf0] sm:$0xff]
        %v408 = vld [vmem:[#allocation7 + $0xf8] sm:$0xff]
        %v409 = vld [vmem:[#allocation7 + $0x100] sm:$0xff]
        %v410 = vld [vmem:[#allocation7 + $0x108] sm:$0xff]
        %v411 = vld [vmem:[#allocation7 + $0x110] sm:$0xff]
        %v412 = vld [vmem:[#allocation7 + $0x118] sm:$0xff]
        %v413 = vld [vmem:[#allocation7 + $0x120] sm:$0xff]
        %v414 = vld [vmem:[#allocation7 + $0x128] sm:$0xff]
        %v415 = vld [vmem:[#allocation7 + $0x130] sm:$0xff]
        %v416 = vld [vmem:[#allocation7 + $0x138] sm:$0xff]
        %v417 = vld [vmem:[#allocation7 + $0x140] sm:$0xff]
        %v418 = vld [vmem:[#allocation7 + $0x148] sm:$0xff]
        %v419 = vld [vmem:[#allocation7 + $0x150] sm:$0xff]
        %v420 = vld [vmem:[#allocation7 + $0x158] sm:$0xff]
        %v421 = vld [vmem:[#allocation7 + $0x160] sm:$0xff]
        %v422 = vld [vmem:[#allocation7 + $0x168] sm:$0xff]
        %v423 = vld [vmem:[#allocation7 + $0x170] sm:$0xff]
        %v424 = vld [vmem:[#allocation7 + $0x178] sm:$0xff]
        %v425 = vld [vmem:[#allocation7 + $0x180] sm:$0xff]
        %v426 = vld [vmem:[#allocation7 + $0x188] sm:$0xff]
        %v427 = vld [vmem:[#allocation7 + $0x190] sm:$0xff]
        %v428 = vld [vmem:[#allocation7 + $0x198] sm:$0xff]
        %v429 = vld [vmem:[#allocation7 + $0x1a0] sm:$0xff]
        %v430 = vld [vmem:[#allocation7 + $0x1a8] sm:$0xff]
        %v431 = vld [vmem:[#allocation7 + $0x1b0] sm:$0xff]
        %v432 = vld [vmem:[#allocation7 + $0x1b8] sm:$0xff]
        %v433 = vld [vmem:[#allocation7 + $0x1c0] sm:$0xff]
        %v434 = vld [vmem:[#allocation7 + $0x1c8] sm:$0xff]
        %v435 = vld [vmem:[#allocation7 + $0x1d0] sm:$0xff]
        %v436 = vld [vmem:[#allocation7 + $0x1d8] sm:$0xff]
        %v437 = vld [vmem:[#allocation7 + $0x1e0] sm:$0xff]
        %v438 = vld [vmem:[#allocation7 + $0x1e8] sm:$0xff]
        %v439 = vld [vmem:[#allocation7 + $0x1f0] sm:$0xff]
        %v440 = vld [vmem:[#allocation7 + $0x1f8] sm:$0xff]
        %v505 = vunpack.c.l.b16 %v377
        %v506 = vunpack.c.h.b16 %v377
        %v507 = vunpack.c.l.b16 %v378
        %v508 = vunpack.c.h.b16 %v378
        %v509 = vunpack.c.l.b16 %v379
        %v510 = vunpack.c.h.b16 %v379
        %v511 = vunpack.c.l.b16 %v380
        %v512 = vunpack.c.h.b16 %v380
        %v513 = vunpack.c.l.b16 %v381
        %v514 = vunpack.c.h.b16 %v381
        %v515 = vunpack.c.l.b16 %v382
        %v516 = vunpack.c.h.b16 %v382
        %v517 = vunpack.c.l.b16 %v383
        %v518 = vunpack.c.h.b16 %v383
        %v519 = vunpack.c.l.b16 %v384
        %v520 = vunpack.c.h.b16 %v384
        %v521 = vunpack.c.l.b16 %v385
        %v522 = vunpack.c.h.b16 %v385
        %v523 = vunpack.c.l.b16 %v386
        %v524 = vunpack.c.h.b16 %v386
        %v525 = vunpack.c.l.b16 %v387
        %v526 = vunpack.c.h.b16 %v387
        %v527 = vunpack.c.l.b16 %v388
        %v528 = vunpack.c.h.b16 %v388
        %v529 = vunpack.c.l.b16 %v389
        %v530 = vunpack.c.h.b16 %v389
        %v531 = vunpack.c.l.b16 %v390
        %v532 = vunpack.c.h.b16 %v390
        %v533 = vunpack.c.l.b16 %v391
        %v534 = vunpack.c.h.b16 %v391
        %v535 = vunpack.c.l.b16 %v392
        %v536 = vunpack.c.h.b16 %v392
        %v537 = vunpack.c.l.b16 %v393
        %v538 = vunpack.c.h.b16 %v393
        %v539 = vunpack.c.l.b16 %v394
        %v540 = vunpack.c.h.b16 %v394
        %v541 = vunpack.c.l.b16 %v395
        %v542 = vunpack.c.h.b16 %v395
        %v543 = vunpack.c.l.b16 %v396
        %v544 = vunpack.c.h.b16 %v396
        %v545 = vunpack.c.l.b16 %v397
        %v546 = vunpack.c.h.b16 %v397
        %v547 = vunpack.c.l.b16 %v398
        %v548 = vunpack.c.h.b16 %v398
        %v549 = vunpack.c.l.b16 %v399
        %v550 = vunpack.c.h.b16 %v399
        %v551 = vunpack.c.l.b16 %v400
        %v552 = vunpack.c.h.b16 %v400
        %v553 = vunpack.c.l.b16 %v401
        %v554 = vunpack.c.h.b16 %v401
        %v555 = vunpack.c.l.b16 %v402
        %v556 = vunpack.c.h.b16 %v402
        %v557 = vunpack.c.l.b16 %v403
        %v558 = vunpack.c.h.b16 %v403
        %v559 = vunpack.c.l.b16 %v404
        %v560 = vunpack.c.h.b16 %v404
        %v561 = vunpack.c.l.b16 %v405
        %v562 = vunpack.c.h.b16 %v405
        %v563 = vunpack.c.l.b16 %v406
        %v564 = vunpack.c.h.b16 %v406
        %v565 = vunpack.c.l.b16 %v407
        %v566 = vunpack.c.h.b16 %v407
        %v567 = vunpack.c.l.b16 %v408
        %v568 = vunpack.c.h.b16 %v408
        %v569 = vunpack.c.l.b16 %v409
        %v570 = vunpack.c.h.b16 %v409
        %v571 = vunpack.c.l.b16 %v410
        %v572 = vunpack.c.h.b16 %v410
        %v573 = vunpack.c.l.b16 %v411
        %v574 = vunpack.c.h.b16 %v411
        %v575 = vunpack.c.l.b16 %v412
        %v576 = vunpack.c.h.b16 %v412
        %v577 = vunpack.c.l.b16 %v413
        %v578 = vunpack.c.h.b16 %v413
        %v579 = vunpack.c.l.b16 %v414
        %v580 = vunpack.c.h.b16 %v414
        %v581 = vunpack.c.l.b16 %v415
        %v582 = vunpack.c.h.b16 %v415
        %v583 = vunpack.c.l.b16 %v416
        %v584 = vunpack.c.h.b16 %v416
        %v585 = vunpack.c.l.b16 %v417
        %v586 = vunpack.c.h.b16 %v417
        %v587 = vunpack.c.l.b16 %v418
        %v588 = vunpack.c.h.b16 %v418
        %v589 = vunpack.c.l.b16 %v419
        %v590 = vunpack.c.h.b16 %v419
        %v591 = vunpack.c.l.b16 %v420
        %v592 = vunpack.c.h.b16 %v420
        %v593 = vunpack.c.l.b16 %v421
        %v594 = vunpack.c.h.b16 %v421
        %v595 = vunpack.c.l.b16 %v422
        %v596 = vunpack.c.h.b16 %v422
        %v597 = vunpack.c.l.b16 %v423
        %v598 = vunpack.c.h.b16 %v423
        %v599 = vunpack.c.l.b16 %v424
        %v600 = vunpack.c.h.b16 %v424
        %v601 = vunpack.c.l.b16 %v425
        %v602 = vunpack.c.h.b16 %v425
        %v603 = vunpack.c.l.b16 %v426
        %v604 = vunpack.c.h.b16 %v426
        %v605 = vunpack.c.l.b16 %v427
        %v606 = vunpack.c.h.b16 %v427
        %v607 = vunpack.c.l.b16 %v428
        %v608 = vunpack.c.h.b16 %v428
        %v609 = vunpack.c.l.b16 %v429
        %v610 = vunpack.c.h.b16 %v429
        %v611 = vunpack.c.l.b16 %v430
        %v612 = vunpack.c.h.b16 %v430
        %v613 = vunpack.c.l.b16 %v431
        %v614 = vunpack.c.h.b16 %v431
        %v615 = vunpack.c.l.b16 %v432
        %v616 = vunpack.c.h.b16 %v432
        %v617 = vunpack.c.l.b16 %v433
        %v618 = vunpack.c.h.b16 %v433
        %v619 = vunpack.c.l.b16 %v434
        %v620 = vunpack.c.h.b16 %v434
        %v621 = vunpack.c.l.b16 %v435
        %v622 = vunpack.c.h.b16 %v435
        %v623 = vunpack.c.l.b16 %v436
        %v624 = vunpack.c.h.b16 %v436
        %v625 = vunpack.c.l.b16 %v437
        %v626 = vunpack.c.h.b16 %v437
        %v627 = vunpack.c.l.b16 %v438
        %v628 = vunpack.c.h.b16 %v438
        %v629 = vunpack.c.l.b16 %v439
        %v630 = vunpack.c.h.b16 %v439
        %v631 = vunpack.c.l.b16 %v440
        %v632 = vunpack.c.h.b16 %v440
        %v633 = vpack.c.b16 %v509, %v505
        %v634 = vpack.c.b16 %v510, %v506
        %v635 = vpack.c.b16 %v511, %v507
        %v636 = vpack.c.b16 %v512, %v508
        %v637 = vpack.c.b16 %v517, %v513
        %v638 = vpack.c.b16 %v518, %v514
        %v639 = vpack.c.b16 %v519, %v515
        %v640 = vpack.c.b16 %v520, %v516
        %v641 = vpack.c.b16 %v525, %v521
        %v642 = vpack.c.b16 %v526, %v522
        %v643 = vpack.c.b16 %v527, %v523
        %v644 = vpack.c.b16 %v528, %v524
        %v645 = vpack.c.b16 %v533, %v529
        %v646 = vpack.c.b16 %v534, %v530
        %v647 = vpack.c.b16 %v535, %v531
        %v648 = vpack.c.b16 %v536, %v532
        %v649 = vpack.c.b16 %v541, %v537
        %v650 = vpack.c.b16 %v542, %v538
        %v651 = vpack.c.b16 %v543, %v539
        %v652 = vpack.c.b16 %v544, %v540
        %v653 = vpack.c.b16 %v549, %v545
        %v654 = vpack.c.b16 %v550, %v546
        %v655 = vpack.c.b16 %v551, %v547
        %v656 = vpack.c.b16 %v552, %v548
        %v657 = vpack.c.b16 %v557, %v553
        %v658 = vpack.c.b16 %v558, %v554
        %v659 = vpack.c.b16 %v559, %v555
        %v660 = vpack.c.b16 %v560, %v556
        %v661 = vpack.c.b16 %v565, %v561
        %v662 = vpack.c.b16 %v566, %v562
        %v663 = vpack.c.b16 %v567, %v563
        %v664 = vpack.c.b16 %v568, %v564
        %v665 = vpack.c.b16 %v573, %v569
        %v666 = vpack.c.b16 %v574, %v570
        %v667 = vpack.c.b16 %v575, %v571
        %v668 = vpack.c.b16 %v576, %v572
        %v669 = vpack.c.b16 %v581, %v577
        %v670 = vpack.c.b16 %v582, %v578
        %v671 = vpack.c.b16 %v583, %v579
        %v672 = vpack.c.b16 %v584, %v580
        %v673 = vpack.c.b16 %v589, %v585
        %v674 = vpack.c.b16 %v590, %v586
        %v675 = vpack.c.b16 %v591, %v587
        %v676 = vpack.c.b16 %v592, %v588
        %v677 = vpack.c.b16 %v597, %v593
        %v678 = vpack.c.b16 %v598, %v594
        %v679 = vpack.c.b16 %v599, %v595
        %v680 = vpack.c.b16 %v600, %v596
        %v681 = vpack.c.b16 %v605, %v601
        %v682 = vpack.c.b16 %v606, %v602
        %v683 = vpack.c.b16 %v607, %v603
        %v684 = vpack.c.b16 %v608, %v604
        %v685 = vpack.c.b16 %v613, %v609
        %v686 = vpack.c.b16 %v614, %v610
        %v687 = vpack.c.b16 %v615, %v611
        %v688 = vpack.c.b16 %v616, %v612
        %v689 = vpack.c.b16 %v621, %v617
        %v690 = vpack.c.b16 %v622, %v618
        %v691 = vpack.c.b16 %v623, %v619
        %v692 = vpack.c.b16 %v624, %v620
        %v693 = vpack.c.b16 %v629, %v625
        %v694 = vpack.c.b16 %v630, %v626
        %v695 = vpack.c.b16 %v631, %v627
        %v696 = vpack.c.b16 %v632, %v628
        %761 = vmatpush.bf16.msra.mxu0 %v661
        %762 = vmatpush.bf16.msra.mxu0 %v657
        %763 = vmatpush.bf16.msra.mxu0 %v653
        %764 = vmatpush.bf16.msra.mxu0 %v649
        %765 = vmatpush.bf16.msra.mxu0 %v645
        %766 = vmatpush.bf16.msra.mxu0 %v641
        %767 = vmatpush.bf16.msra.mxu0 %v637
        %768 = vmatpush.bf16.msra.mxu0 %v633
        %769 = vmatmul.bf16.gmra.mxu0 %v375
        %v770 = vpop.f32.mrf.mxu0
        %v771 = vadd.f32 0.0, %v770
        %v772 = vpop.f32.mrf.mxu0
        %773 = vdwg.mxu0
        %774 = vmatpush.bf16.msra.mxu0 %v693
        %775 = vmatpush.bf16.msra.mxu0 %v689
        %776 = vmatpush.bf16.msra.mxu0 %v685
        %777 = vmatpush.bf16.msra.mxu0 %v681
        %778 = vmatpush.bf16.msra.mxu0 %v677
        %779 = vmatpush.bf16.msra.mxu0 %v673
        %780 = vmatpush.bf16.msra.mxu0 %v669
        %781 = vmatpush.bf16.msra.mxu0 %v665
        %782 = vmatmul.bf16.gmra.mxu0 %v376
        %v783 = vpop.f32.mrf.mxu0
        %v784 = vadd.f32 %v771, %v783
        %v785 = vpop.f32.mrf.mxu0
        %786 = vdwg.mxu0
        %787 = vmatpush.bf16.msra.mxu0 %v662
        %788 = vmatpush.bf16.msra.mxu0 %v658
        %789 = vmatpush.bf16.msra.mxu0 %v654
        %790 = vmatpush.bf16.msra.mxu0 %v650
        %791 = vmatpush.bf16.msra.mxu0 %v646
        %792 = vmatpush.bf16.msra.mxu0 %v642
        %793 = vmatpush.bf16.msra.mxu0 %v638
        %794 = vmatpush.bf16.msra.mxu0 %v634
        %795 = vmatmul.bf16.gmra.mxu0 %v375
        %v796 = vpop.f32.mrf.mxu0
        %v797 = vadd.f32 0.0, %v796
        %v798 = vpop.f32.mrf.mxu0
        %799 = vdwg.mxu0
        %800 = vmatpush.bf16.msra.mxu0 %v694
        %801 = vmatpush.bf16.msra.mxu0 %v690
        %802 = vmatpush.bf16.msra.mxu0 %v686
        %803 = vmatpush.bf16.msra.mxu0 %v682
        %804 = vmatpush.bf16.msra.mxu0 %v678
        %805 = vmatpush.bf16.msra.mxu0 %v674
        %806 = vmatpush.bf16.msra.mxu0 %v670
        %807 = vmatpush.bf16.msra.mxu0 %v666
        %808 = vmatmul.bf16.gmra.mxu0 %v376
        %v809 = vpop.f32.mrf.mxu0
        %v810 = vadd.f32 %v797, %v809
        %v811 = vpop.f32.mrf.mxu0
        %812 = vdwg.mxu0
        %813 = vmatpush.bf16.msra.mxu0 %v663
        %814 = vmatpush.bf16.msra.mxu0 %v659
        %815 = vmatpush.bf16.msra.mxu0 %v655
        %816 = vmatpush.bf16.msra.mxu0 %v651
        %817 = vmatpush.bf16.msra.mxu0 %v647
        %818 = vmatpush.bf16.msra.mxu0 %v643
        %819 = vmatpush.bf16.msra.mxu0 %v639
        %820 = vmatpush.bf16.msra.mxu0 %v635
        %821 = vmatmul.bf16.gmra.mxu0 %v375
        %v822 = vpop.f32.mrf.mxu0
        %v823 = vadd.f32 0.0, %v822
        %v824 = vpop.f32.mrf.mxu0
        %825 = vdwg.mxu0
        %826 = vmatpush.bf16.msra.mxu0 %v695
        %827 = vmatpush.bf16.msra.mxu0 %v691
        %828 = vmatpush.bf16.msra.mxu0 %v687
        %829 = vmatpush.bf16.msra.mxu0 %v683
        %830 = vmatpush.bf16.msra.mxu0 %v679
        %831 = vmatpush.bf16.msra.mxu0 %v675
        %832 = vmatpush.bf16.msra.mxu0 %v671
        %833 = vmatpush.bf16.msra.mxu0 %v667
        %834 = vmatmul.bf16.gmra.mxu0 %v376
        %v835 = vpop.f32.mrf.mxu0
        %v836 = vadd.f32 %v823, %v835
        %v837 = vpop.f32.mrf.mxu0
        %838 = vdwg.mxu0
        %839 = vmatpush.bf16.msra.mxu0 %v664
        %840 = vmatpush.bf16.msra.mxu0 %v660
        %841 = vmatpush.bf16.msra.mxu0 %v656
        %842 = vmatpush.bf16.msra.mxu0 %v652
        %843 = vmatpush.bf16.msra.mxu0 %v648
        %844 = vmatpush.bf16.msra.mxu0 %v644
        %845 = vmatpush.bf16.msra.mxu0 %v640
        %846 = vmatpush.bf16.msra.mxu0 %v636
        %847 = vmatmul.bf16.gmra.mxu0 %v375
        %v848 = vpop.f32.mrf.mxu0
        %v849 = vadd.f32 0.0, %v848
        %v850 = vpop.f32.mrf.mxu0
        %851 = vdwg.mxu0
        %852 = vmatpush.bf16.msra.mxu0 %v696
        %853 = vmatpush.bf16.msra.mxu0 %v692
        %854 = vmatpush.bf16.msra.mxu0 %v688
        %855 = vmatpush.bf16.msra.mxu0 %v684
        %856 = vmatpush.bf16.msra.mxu0 %v680
        %857 = vmatpush.bf16.msra.mxu0 %v676
        %858 = vmatpush.bf16.msra.mxu0 %v672
        %859 = vmatpush.bf16.msra.mxu0 %v668
        %860 = vmatmul.bf16.gmra.mxu0 %v376
        %v861 = vpop.f32.mrf.mxu0
        %v862 = vadd.f32 %v849, %v861
        %v863 = vpop.f32.mrf.mxu0
        %864 = vdwg.mxu0
        %v865 = vmul.f32 %v784, 0.5
        %v866 = vtanh.pop %v865
        %v867 = vmul.f32 %v866, 0.5
        %v868 = vadd.f32 %v867, 0.5
        %v869 = vmul.f32 %v810, 0.5
        %v870 = vtanh.pop %v869
        %v871 = vmul.f32 %v870, 0.5
        %v872 = vadd.f32 %v871, 0.5
        %v873 = vmul.f32 %v862, 0.5
        %v874 = vtanh.pop %v873
        %v875 = vmul.f32 %v874, 0.5
        %v876 = vadd.f32 %v875, 0.5
        %v877 = vld [vmem:[#allocation9] sm:$0xff]
        %vm878 = vcmask 64512
        %v880 = vsel %vm878, %v877, 0
        %882 = vmatpush.msra.mxu0 0.0
        %883 = vmatpush.msra.mxu0 0.0
        %884 = vmatpush.msra.mxu0 0.0
        %885 = vmatpush.msra.mxu0 0.0
        %886 = vmatpush.msra.mxu0 0.0
        %887 = vmatpush.msra.mxu0 0.0
        %888 = vmatpush.msra.mxu0 0.0
        %889 = vmatpush.msra.mxu0 0.0
        %890 = vmatpush.msra.mxu0 0.0
        %891 = vmatpush.msra.mxu0 0.0
        %892 = vmatpush.msra.mxu0 0.0
        %893 = vmatpush.msra.mxu0 0.0
        %894 = vmatpush.msra.mxu0 0.0
        %895 = vmatpush.msra.mxu0 0.0
        %896 = vmatpush.msra.mxu0 0.0
        %897 = vmatpush.msra.mxu0 %v836
        %898 = vmatmul.f32.gmra.mxu0 %v880
        %v899 = vpop.f32.mrf.mxu0
        %v900 = vadd.f32 0.0, %v899
        %901 = vdwg.mxu0
        %v902 = vtanh.pop %v900
        %v903 = vmul.f32 %v872, %v374
        %v904 = vmul.f32 %v868, %v902
        %v905 = vadd.f32 %v903, %v904
        %v906 = vtanh.pop %v905
        %v907 = vmul.f32 %v876, %v906
        %908 = vst [vmem:[#allocation3] sm:$0xff] %v905
        %909 = vst [vmem:[#allocation2] sm:$0xff] %v907
        %v910 = vpack.c.bf16 %v907, %v907
        %v911 = vld [vmem:[#allocation10] sm:$0xf]
        %v912 = vld [vmem:[#allocation10 + $0x4] sm:$0xf]
        %v913 = vld [vmem:[#allocation10 + $0x8] sm:$0xf]
        %v914 = vld [vmem:[#allocation10 + $0xc] sm:$0xf]
        %v915 = vld [vmem:[#allocation10 + $0x10] sm:$0xf]
        %v916 = vld [vmem:[#allocation10 + $0x14] sm:$0xf]
        %v917 = vld [vmem:[#allocation10 + $0x18] sm:$0xf]
        %v918 = vld [vmem:[#allocation10 + $0x1c] sm:$0xf]
        %v919 = vld [vmem:[#allocation10 + $0x20] sm:$0xf]
        %v920 = vld [vmem:[#allocation10 + $0x24] sm:$0xf]
        %v921 = vld [vmem:[#allocation10 + $0x28] sm:$0xf]
        %v922 = vld [vmem:[#allocation10 + $0x2c] sm:$0xf]
        %v923 = vld [vmem:[#allocation10 + $0x30] sm:$0xf]
        %v924 = vld [vmem:[#allocation10 + $0x34] sm:$0xf]
        %v925 = vld [vmem:[#allocation10 + $0x38] sm:$0xf]
        %v926 = vld [vmem:[#allocation10 + $0x3c] sm:$0xf]
        %v943 = vunpack.c.l.b16 %v911
        %v944 = vunpack.c.l.b16 %v912
        %v945 = vunpack.c.l.b16 %v913
        %v946 = vunpack.c.l.b16 %v914
        %v947 = vunpack.c.l.b16 %v915
        %v948 = vunpack.c.l.b16 %v916
        %v949 = vunpack.c.l.b16 %v917
        %v950 = vunpack.c.l.b16 %v918
        %v951 = vunpack.c.l.b16 %v919
        %v952 = vunpack.c.l.b16 %v920
        %v953 = vunpack.c.l.b16 %v921
        %v954 = vunpack.c.l.b16 %v922
        %v955 = vunpack.c.l.b16 %v923
        %v956 = vunpack.c.l.b16 %v924
        %v957 = vunpack.c.l.b16 %v925
        %v958 = vunpack.c.l.b16 %v926
        %v959 = vpack.c.b16 %v944, %v943
        %v960 = vpack.c.b16 %v946, %v945
        %v961 = vpack.c.b16 %v948, %v947
        %v962 = vpack.c.b16 %v950, %v949
        %v963 = vpack.c.b16 %v952, %v951
        %v964 = vpack.c.b16 %v954, %v953
        %v965 = vpack.c.b16 %v956, %v955
        %v966 = vpack.c.b16 %v958, %v957
        %975 = vmatpush.bf16.msra.mxu0 %v966
        %976 = vmatpush.bf16.msra.mxu0 %v965
        %977 = vmatpush.bf16.msra.mxu0 %v964
        %978 = vmatpush.bf16.msra.mxu0 %v963
        %979 = vmatpush.bf16.msra.mxu0 %v962
        %980 = vmatpush.bf16.msra.mxu0 %v961
        %981 = vmatpush.bf16.msra.mxu0 %v960
        %982 = vmatpush.bf16.msra.mxu0 %v959
        %983 = vmatmul.bf16.gmra.mxu0 %v910
        %v984 = vpop.f32.mrf.mxu0
        %v985 = vadd.f32 0.0, %v984
        %v986 = vpop.f32.mrf.mxu0
        %987 = vdwg.mxu0
        %988 = vst [vmem:[%s363] sm:$0xff] %v985
        %s989 = sand.u32 %s181, 1
        %s990 = scalar_lea.sflag [#allocation6], %s989
        %s991 = sand.u32 %s181, 1
        %s992 = smul.addr %s991, 8
        %s993 = scalar_lea.vmem [#allocation15], %s992
        // Predicated region
        $region73: #{tpu_custom_call.1} parent=43 // pred_check
          %p994 = pneg %p191
        $region74: #{tpu_custom_call.1} parent=43 // pred_check_branch
          %996 = sbr.rel (%p994) target = $region76
        $region75: #{tpu_custom_call.1} parent=43 // pred_region
          %998 = vsyncadd %s990, 0
          %s999 = smul.addr %s30, 4
          %s1000 = sadd.s32 %s31, %s999
          %s1001 = smul.addr %s1000, 8
          %s1002 = scalar_lea.hbm %s6, %s1001
          %s1004 = sshll.u32 %s993, 4
          %s1005 = int_to_ptr.vmem [resolvable:$true] %s1004
          %s1006 = sshll.u32 %s1002, 4
          %s1007 = int_to_ptr.hbm [resolvable:$true] %s1006
          %1009 = dma.vmem_to_hbm [thread:$0]  %s1005, 128, %s1007, %s990
        $region76: #{tpu_custom_call.1} parent=43 // pred_fallthru
          _
      $region44: #{tpu_custom_call.1} parent=5 // pred_fallthru
        _
      %p1010 = scmp.le.s32.totalorder 2, %s21
      // Predicated region
      $region77: #{tpu_custom_call.1} parent=5 // pred_check
        %p1011 = pneg %p1010
      $region78: #{tpu_custom_call.1} parent=5 // pred_check_branch
        %1013 = sbr.rel (%p1011) target = $region80
      $region79: #{tpu_custom_call.1} parent=5 // pred_region
        %s1014 = ssub.s32 %s21, 2
        // Predicated region
        $region81: #{tpu_custom_call.1} parent=79 // pred_check
          %p1015 = pneg %p197
        $region82: #{tpu_custom_call.1} parent=79 // pred_check_branch
          %1017 = sbr.rel (%p1015) target = $region84
        $region83: #{tpu_custom_call.1} parent=79 // pred_region
          %s1018 = sand.u32 %s182, 1
          %s1019 = scalar_lea.sflag [#allocation6], %s1018
          %s1020 = sand.u32 %s182, 1
          %s1021 = smul.addr %s1020, 8
          %s1022 = scalar_lea.vmem [#allocation15], %s1021
          %1024 = dma.done %s1019, 128
        $region84: #{tpu_custom_call.1} parent=79 // pred_fallthru
          _
      $region80: #{tpu_custom_call.1} parent=5 // pred_fallthru
        _
    $region6: #{tpu_custom_call.1} parent=1 // loop_footer
      %s25 = sadd.s32 1, %s21
    $region7: #{tpu_custom_call.1} parent=1 // loop_footer_branch
      %20 = sbr.rel target = $region3
    $region8: #{tpu_custom_call.1} parent=1 // loop_exit
      _
    %1025 = vsyncpa [#allocation5], 1
    %s1026 = scalar_lea.sflag [#allocation5], 1
    %1027 = vsyncpa %s1026, 1
    %1028 = vsyncpa [#allocation8], 1
    %1029 = vsyncpa [#allocation11], 1
    %1030 = vsyncpa [#allocation14], 1
    %1031 = vsyncpa [#allocation6], 1
    %s1032 = scalar_lea.sflag [#allocation6], 1
    %1033 = vsyncpa %s1032, 1

</llo_original>
